<compile_context>
chip_gen: v6e
topology: v6e:2x2x1
jax: 0.10.0
libtpu: 0.0.40
codegen_flags: <defaults>
</compile_context>

<pallas_src>
import math
import jax
import jax.numpy as jnp
from jax.experimental import pallas as pl
from jax.experimental.pallas import tpu as pltpu

# ---- model hyperparameters (small, consistent with the module) -------------
S = 8            # sequence length
B = 2            # batch
BS = B * S       # flattened token count
D_MODEL = 32     # d_model
NHEAD = 4        # nhead
HEAD_DIM = D_MODEL // NHEAD
DIM_FF = 64      # dim_feedforward
LN_EPS = 1e-5


def _layernorm(x, gamma, beta):
    # PyTorch LayerNorm: biased variance over last dim.
    mu = jnp.mean(x, axis=-1, keepdims=True)
    xc = x - mu
    var = jnp.mean(xc * xc, axis=-1, keepdims=True)
    inv = jax.lax.rsqrt(var + LN_EPS)
    return xc * inv * gamma + beta


def encoder_layer_kernel(x_ref, p_ref, mask_ref,
                         wqkv_ref, bqkv_ref, wot_ref, bo_ref,
                         g1_ref, be1_ref,
                         w1t_ref, b1_ref, w2t_ref, b2_ref,
                         g2_ref, be2_ref,
                         out_ref):
    x = x_ref[...]                      # (BS, D)   flattened (batch-major) tokens
    qk_in = x + p_ref[...]              # q = k = with_pos_embed(src, pos)

    # --- fused Q/K/V in-projection: one (2*BS, D) x (D, 3D) MXU pass --------
    inp = jnp.concatenate([qk_in, x], axis=0)                     # (2*BS, D)
    proj = jnp.dot(inp, wqkv_ref[...],
                   preferred_element_type=jnp.float32) + bqkv_ref[...]  # (2*BS, 3D)

    scale = 1.0 / math.sqrt(HEAD_DIM)
    q = proj[:BS, 0:D_MODEL] * scale                 # scale applied once
    k = proj[:BS, D_MODEL:2 * D_MODEL]
    v = proj[BS:, 2 * D_MODEL:3 * D_MODEL]

    neg_mask = mask_ref[...]                         # (BS, BS): 0 same-batch, -1e9 else

    # --- multi-head self-attention, heads fully unrolled ---------------------
    attn_acc = jnp.zeros((BS, D_MODEL), jnp.float32)
    for h in range(NHEAD):
        lo = h * HEAD_DIM
        hi = lo + HEAD_DIM
        qh = q[:, lo:hi]                             # (BS, hd)
        kh = k[:, lo:hi]
        vh = v[:, lo:hi]
        # contract on the last dim of both operands (no explicit transpose)
        s = jax.lax.dot_general(qh, kh, (((1,), (1,)), ((), ())),
                                preferred_element_type=jnp.float32)  # (BS, BS)
        s = s + neg_mask
        m = jnp.max(s, axis=-1, keepdims=True)
        e = jnp.exp(s - m)
        denom = jnp.sum(e, axis=-1, keepdims=True)
        a = e * pl.reciprocal(denom, approx=True)
        ctx = jnp.dot(a, vh, preferred_element_type=jnp.float32)     # (BS, hd)
        # accumulate the output projection directly (no scratch, no partial stores)
        attn_acc = attn_acc + jnp.dot(ctx, wot_ref[lo:hi, :],
                                      preferred_element_type=jnp.float32)

    attn = attn_acc + bo_ref[...]

    # --- residual + norm1 ----------------------------------------------------
    x1 = _layernorm(x + attn, g1_ref[...], be1_ref[...])

    # --- feed-forward (relu) + residual + norm2 ------------------------------
    h1 = jnp.maximum(
        jnp.dot(x1, w1t_ref[...], preferred_element_type=jnp.float32) + b1_ref[...],
        0.0)
    y = jnp.dot(h1, w2t_ref[...], preferred_element_type=jnp.float32) + b2_ref[...]
    out_ref[...] = _layernorm(x1 + y, g2_ref[...], be2_ref[...])


def transformer_encoder_layer(src, pos, params):
    """src, pos: (S, B, D) float32.  Returns (S, B, D)."""
    # flatten to batch-major token rows (B*S, D)
    x_flat = jnp.transpose(src, (1, 0, 2)).reshape(BS, D_MODEL)
    p_flat = jnp.transpose(pos, (1, 0, 2)).reshape(BS, D_MODEL)

    # additive block-diagonal mask: 0 for same-batch token pairs, -1e9 otherwise
    tok_b = jnp.arange(BS, dtype=jnp.int32) // S
    neg_mask = jnp.where(tok_b[:, None] == tok_b[None, :], 0.0, -1e9).astype(jnp.float32)

    # fused QKV weights / biases
    w_qkv = jnp.concatenate([params["wqt"], params["wkt"], params["wvt"]], axis=1)  # (D, 3D)
    b_qkv = jnp.concatenate([params["bq"], params["bk"], params["bv"]], axis=1)     # (1, 3D)

    inputs = [
        x_flat, p_flat, neg_mask,
        w_qkv, b_qkv, params["wot"], params["bo"],
        params["g1"], params["be1"],
        params["w1t"], params["b1"], params["w2t"], params["b2"],
        params["g2"], params["be2"],
    ]
    in_specs = [pl.BlockSpec(a.shape, lambda i: (0, 0)) for a in inputs]

    out = pl.pallas_call(
        encoder_layer_kernel,
        out_shape=jax.ShapeDtypeStruct((BS, D_MODEL), jnp.float32),
        grid_spec=pltpu.PrefetchScalarGridSpec(
            num_scalar_prefetch=0,
            grid=(1,),
            in_specs=in_specs,
            out_specs=pl.BlockSpec((BS, D_MODEL), lambda i: (0, 0)),
        ),
        compiler_params=pltpu.CompilerParams(
            dimension_semantics=("arbitrary",)),
    )(*inputs)

    return jnp.transpose(out.reshape(B, S, D_MODEL), (1, 0, 2))      # back to (S, B, D)


# ---- pure-JAX reference (same math as PyTorch module, eval mode) ------------
def reference(src, pos, params):
    x = src                                    # (S, B, D)
    qk = x + pos
    q = jnp.einsum("sbd,de->sbe", qk, params["wqt"]) + params["bq"][0]
    k = jnp.einsum("sbd,de->sbe", qk, params["wkt"]) + params["bk"][0]
    v = jnp.einsum("sbd,de->sbe", x, params["wvt"]) + params["bv"][0]

    def split(t):  # (S,B,D) -> (B,H,S,hd)
        return jnp.transpose(t.reshape(S, B, NHEAD, HEAD_DIM), (1, 2, 0, 3))

    qh, kh, vh = split(q), split(k), split(v)
    scores = jnp.einsum("bhqd,bhkd->bhqk", qh * (HEAD_DIM ** -0.5), kh)
    attn = jax.nn.softmax(scores, axis=-1)
    ctx = jnp.einsum("bhqk,bhkd->bhqd", attn, vh)        # (B,H,S,hd)
    ctx = jnp.transpose(ctx, (2, 0, 1, 3)).reshape(S, B, D_MODEL)
    attn_out = jnp.einsum("sbd,de->sbe", ctx, params["wot"]) + params["bo"][0]

    def ln(t, g, b):
        mu = jnp.mean(t, axis=-1, keepdims=True)
        var = jnp.mean((t - mu) ** 2, axis=-1, keepdims=True)
        return (t - mu) * jax.lax.rsqrt(var + LN_EPS) * g[0] + b[0]

    x1 = ln(x + attn_out, params["g1"], params["be1"])
    hid = jax.nn.relu(jnp.einsum("sbd,df->sbf", x1, params["w1t"]) + params["b1"][0])
    y = jnp.einsum("sbf,fd->sbd", hid, params["w2t"]) + params["b2"][0]
    return ln(x1 + y, params["g2"], params["be2"])


def make_params(key):
    ks = jax.random.split(key, 12)
    s = 0.05
    p = {
        # attention in-projection (already transposed: x @ W^T -> x @ Wt)
        "wqt": s * jax.random.normal(ks[0], (D_MODEL, D_MODEL), jnp.float32),
        "wkt": s * jax.random.normal(ks[1], (D_MODEL, D_MODEL), jnp.float32),
        "wvt": s * jax.random.normal(ks[2], (D_MODEL, D_MODEL), jnp.float32),
        "bq": s * jax.random.normal(ks[3], (1, D_MODEL), jnp.float32),
        "bk": s * jax.random.normal(ks[4], (1, D_MODEL), jnp.float32),
        "bv": s * jax.random.normal(ks[5], (1, D_MODEL), jnp.float32),
        # attention out-projection
        "wot": s * jax.random.normal(ks[6], (D_MODEL, D_MODEL), jnp.float32),
        "bo": s * jax.random.normal(ks[7], (1, D_MODEL), jnp.float32),
        # layer norms
        "g1": jnp.ones((1, D_MODEL), jnp.float32),
        "be1": jnp.zeros((1, D_MODEL), jnp.float32),
        "g2": jnp.ones((1, D_MODEL), jnp.float32),
        "be2": jnp.zeros((1, D_MODEL), jnp.float32),
        # feed-forward
        "w1t": s * jax.random.normal(ks[8], (D_MODEL, DIM_FF), jnp.float32),
        "b1": s * jax.random.normal(ks[9], (1, DIM_FF), jnp.float32),
        "w2t": s * jax.random.normal(ks[10], (DIM_FF, D_MODEL), jnp.float32),
        "b2": s * jax.random.normal(ks[11], (1, D_MODEL), jnp.float32),
    }
    return p


if __name__ == "__main__":
    key = jax.random.PRNGKey(0)
    k_src, k_pos, k_par = jax.random.split(key, 3)

    src = jax.random.normal(k_src, (S, B, D_MODEL), jnp.float32)
    pos = jax.random.normal(k_pos, (S, B, D_MODEL), jnp.float32)
    params = make_params(k_par)

    out = transformer_encoder_layer(src, pos, params)
    out = jax.block_until_ready(out)

    ref = reference(src, pos, params)
    assert out.shape == (S, B, D_MODEL)
    # tolerance 1e-3: pl.reciprocal(approx=True) in the softmax denominator
    # introduces ~1e-4 relative error vs. the exact f32 divide.
    assert jnp.allclose(out, ref, atol=1e-3, rtol=1e-3), "mismatch vs reference"

    print("KERNEL_OK")
</pallas_src>

<mosaic_0001>
module attributes {stable_mosaic.version = 11 : i64} {
  func.func @encoder_layer_kernel(%arg0: i32, %arg1: memref<16x32xf32, #tpu.memory_space<vmem>>, %arg2: memref<16x32xf32, #tpu.memory_space<vmem>>, %arg3: memref<16x16xf32, #tpu.memory_space<vmem>>, %arg4: memref<32x96xf32, #tpu.memory_space<vmem>>, %arg5: memref<1x96xf32, #tpu.memory_space<vmem>>, %arg6: memref<32x32xf32, #tpu.memory_space<vmem>>, %arg7: memref<1x32xf32, #tpu.memory_space<vmem>>, %arg8: memref<1x32xf32, #tpu.memory_space<vmem>>, %arg9: memref<1x32xf32, #tpu.memory_space<vmem>>, %arg10: memref<32x64xf32, #tpu.memory_space<vmem>>, %arg11: memref<1x64xf32, #tpu.memory_space<vmem>>, %arg12: memref<64x32xf32, #tpu.memory_space<vmem>>, %arg13: memref<1x32xf32, #tpu.memory_space<vmem>>, %arg14: memref<1x32xf32, #tpu.memory_space<vmem>>, %arg15: memref<1x32xf32, #tpu.memory_space<vmem>>, %arg16: memref<16x32xf32, #tpu.memory_space<vmem>>) attributes {dimension_semantics = [#tpu.dimension_semantics<arbitrary>], iteration_bounds = array<i64: 1>, scalar_prefetch = 0 : i64, scratch_operands = 0 : i64, tpu.core_type = #tpu.core_type<tc>, window_params = [{pipeline_mode = #tpu.pipeline_mode<synchronous>, transform_indices = @transform_0, window_bounds = array<i64: 16, 32>}, {pipeline_mode = #tpu.pipeline_mode<synchronous>, transform_indices = @transform_1, window_bounds = array<i64: 16, 32>}, {pipeline_mode = #tpu.pipeline_mode<synchronous>, transform_indices = @transform_2, window_bounds = array<i64: 16, 16>}, {pipeline_mode = #tpu.pipeline_mode<synchronous>, transform_indices = @transform_3, window_bounds = array<i64: 32, 96>}, {pipeline_mode = #tpu.pipeline_mode<synchronous>, transform_indices = @transform_4, window_bounds = array<i64: 1, 96>}, {pipeline_mode = #tpu.pipeline_mode<synchronous>, transform_indices = @transform_5, window_bounds = array<i64: 32, 32>}, {pipeline_mode = #tpu.pipeline_mode<synchronous>, transform_indices = @transform_6, window_bounds = array<i64: 1, 32>}, {pipeline_mode = #tpu.pipeline_mode<synchronous>, transform_indices = @transform_7, window_bounds = array<i64: 1, 32>}, {pipeline_mode = #tpu.pipeline_mode<synchronous>, transform_indices = @transform_8, window_bounds = array<i64: 1, 32>}, {pipeline_mode = #tpu.pipeline_mode<synchronous>, transform_indices = @transform_9, window_bounds = array<i64: 32, 64>}, {pipeline_mode = #tpu.pipeline_mode<synchronous>, transform_indices = @transform_10, window_bounds = array<i64: 1, 64>}, {pipeline_mode = #tpu.pipeline_mode<synchronous>, transform_indices = @transform_11, window_bounds = array<i64: 64, 32>}, {pipeline_mode = #tpu.pipeline_mode<synchronous>, transform_indices = @transform_12, window_bounds = array<i64: 1, 32>}, {pipeline_mode = #tpu.pipeline_mode<synchronous>, transform_indices = @transform_13, window_bounds = array<i64: 1, 32>}, {pipeline_mode = #tpu.pipeline_mode<synchronous>, transform_indices = @transform_14, window_bounds = array<i64: 1, 32>}, {pipeline_mode = #tpu.pipeline_mode<synchronous>, transform_indices = @transform_15, window_bounds = array<i64: 16, 32>}]} {
    %c0 = arith.constant 0 : index
    %c0_0 = arith.constant 0 : index
    %0 = vector.load %arg1[%c0, %c0_0] : memref<16x32xf32, #tpu.memory_space<vmem>>, vector<16x32xf32>
    %c0_1 = arith.constant 0 : index
    %c0_2 = arith.constant 0 : index
    %1 = vector.load %arg2[%c0_1, %c0_2] : memref<16x32xf32, #tpu.memory_space<vmem>>, vector<16x32xf32>
    %2 = arith.addf %0, %1 : vector<16x32xf32>
    %3 = tpu.concatenate %2, %0 in 0 : vector<16x32xf32>, vector<16x32xf32> -> vector<32x32xf32>
    %c0_3 = arith.constant 0 : index
    %c0_4 = arith.constant 0 : index
    %4 = vector.load %arg4[%c0_3, %c0_4] : memref<32x96xf32, #tpu.memory_space<vmem>>, vector<32x96xf32>
    %cst = arith.constant dense<0.000000e+00> : vector<32x96xf32>
    %5 = tpu.matmul %3, %4, %cst {dimension_numbers = #tpu.dot_dimension_numbers<[1], [0], [0], [1], [0, 0, 1, 1], [], []>} : vector<32x32xf32>, vector<32x96xf32>, vector<32x96xf32> -> vector<32x96xf32>
    %c0_5 = arith.constant 0 : index
    %c0_6 = arith.constant 0 : index
    %6 = vector.load %arg5[%c0_5, %c0_6] : memref<1x96xf32, #tpu.memory_space<vmem>>, vector<1x96xf32>
    %7 = vector.broadcast %6 : vector<1x96xf32> to vector<32x96xf32>
    %8 = arith.addf %5, %7 : vector<32x96xf32>
    %9 = vector.extract_strided_slice %8 {offsets = [0, 0], sizes = [16, 32], strides = [1, 1]} : vector<32x96xf32> to vector<16x32xf32>
    %cst_7 = arith.constant 0.353553385 : f32
    %10 = vector.broadcast %cst_7 : f32 to vector<16x32xf32>
    %11 = arith.mulf %9, %10 : vector<16x32xf32>
    %12 = vector.extract_strided_slice %8 {offsets = [0, 32], sizes = [16, 32], strides = [1, 1]} : vector<32x96xf32> to vector<16x32xf32>
    %13 = vector.extract_strided_slice %8 {offsets = [16, 64], sizes = [16, 32], strides = [1, 1]} : vector<32x96xf32> to vector<16x32xf32>
    %c0_8 = arith.constant 0 : index
    %c0_9 = arith.constant 0 : index
    %14 = vector.load %arg3[%c0_8, %c0_9] : memref<16x16xf32, #tpu.memory_space<vmem>>, vector<16x16xf32>
    %cst_10 = arith.constant 0.000000e+00 : f32
    %15 = vector.broadcast %cst_10 : f32 to vector<16x32xf32>
    %16 = vector.extract_strided_slice %11 {offsets = [0, 0], sizes = [16, 8], strides = [1, 1]} : vector<16x32xf32> to vector<16x8xf32>
    %17 = vector.extract_strided_slice %12 {offsets = [0, 0], sizes = [16, 8], strides = [1, 1]} : vector<16x32xf32> to vector<16x8xf32>
    %18 = vector.extract_strided_slice %13 {offsets = [0, 0], sizes = [16, 8], strides = [1, 1]} : vector<16x32xf32> to vector<16x8xf32>
    %cst_11 = arith.constant dense<0.000000e+00> : vector<16x16xf32>
    %19 = tpu.matmul %16, %17, %cst_11 {dimension_numbers = #tpu.dot_dimension_numbers<[1], [1], [0], [0], [0, 0, 1, 0], [], []>} : vector<16x8xf32>, vector<16x8xf32>, vector<16x16xf32> -> vector<16x16xf32>
    %20 = arith.addf %19, %14 : vector<16x16xf32>
    %cst_12 = arith.constant dense<0xFF800000> : vector<16xf32>
    %21 = vector.multi_reduction <maximumf>, %20, %cst_12 [1] : vector<16x16xf32> to vector<16xf32>
    %22 = vector.shape_cast %21 : vector<16xf32> to vector<16x1xf32>
    %23 = vector.broadcast %22 : vector<16x1xf32> to vector<16x16xf32>
    %24 = arith.subf %20, %23 : vector<16x16xf32>
    %25 = math.exp %24 : vector<16x16xf32>
    %cst_13 = arith.constant dense<0.000000e+00> : vector<16xf32>
    %26 = vector.multi_reduction <add>, %25, %cst_13 [1] : vector<16x16xf32> to vector<16xf32>
    %27 = vector.shape_cast %26 : vector<16xf32> to vector<16x1xf32>
    %28 = tpu.reciprocal %27 {approx = true} : vector<16x1xf32> -> vector<16x1xf32>
    %29 = vector.broadcast %28 : vector<16x1xf32> to vector<16x16xf32>
    %30 = arith.mulf %25, %29 : vector<16x16xf32>
    %cst_14 = arith.constant dense<0.000000e+00> : vector<16x8xf32>
    %31 = tpu.matmul %30, %18, %cst_14 {dimension_numbers = #tpu.dot_dimension_numbers<[1], [0], [0], [1], [0, 0, 1, 1], [], []>} : vector<16x16xf32>, vector<16x8xf32>, vector<16x8xf32> -> vector<16x8xf32>
    %c0_15 = arith.constant 0 : index
    %c0_16 = arith.constant 0 : index
    %32 = vector.load %arg6[%c0_15, %c0_16] : memref<32x32xf32, #tpu.memory_space<vmem>>, vector<8x32xf32>
    %cst_17 = arith.constant dense<0.000000e+00> : vector<16x32xf32>
    %33 = tpu.matmul %31, %32, %cst_17 {dimension_numbers = #tpu.dot_dimension_numbers<[1], [0], [0], [1], [0, 0, 1, 1], [], []>} : vector<16x8xf32>, vector<8x32xf32>, vector<16x32xf32> -> vector<16x32xf32>
    %34 = arith.addf %15, %33 : vector<16x32xf32>
    %35 = vector.extract_strided_slice %11 {offsets = [0, 8], sizes = [16, 8], strides = [1, 1]} : vector<16x32xf32> to vector<16x8xf32>
    %36 = vector.extract_strided_slice %12 {offsets = [0, 8], sizes = [16, 8], strides = [1, 1]} : vector<16x32xf32> to vector<16x8xf32>
    %37 = vector.extract_strided_slice %13 {offsets = [0, 8], sizes = [16, 8], strides = [1, 1]} : vector<16x32xf32> to vector<16x8xf32>
    %cst_18 = arith.constant dense<0.000000e+00> : vector<16x16xf32>
    %38 = tpu.matmul %35, %36, %cst_18 {dimension_numbers = #tpu.dot_dimension_numbers<[1], [1], [0], [0], [0, 0, 1, 0], [], []>} : vector<16x8xf32>, vector<16x8xf32>, vector<16x16xf32> -> vector<16x16xf32>
    %39 = arith.addf %38, %14 : vector<16x16xf32>
    %cst_19 = arith.constant dense<0xFF800000> : vector<16xf32>
    %40 = vector.multi_reduction <maximumf>, %39, %cst_19 [1] : vector<16x16xf32> to vector<16xf32>
    %41 = vector.shape_cast %40 : vector<16xf32> to vector<16x1xf32>
    %42 = vector.broadcast %41 : vector<16x1xf32> to vector<16x16xf32>
    %43 = arith.subf %39, %42 : vector<16x16xf32>
    %44 = math.exp %43 : vector<16x16xf32>
    %cst_20 = arith.constant dense<0.000000e+00> : vector<16xf32>
    %45 = vector.multi_reduction <add>, %44, %cst_20 [1] : vector<16x16xf32> to vector<16xf32>
    %46 = vector.shape_cast %45 : vector<16xf32> to vector<16x1xf32>
    %47 = tpu.reciprocal %46 {approx = true} : vector<16x1xf32> -> vector<16x1xf32>
    %48 = vector.broadcast %47 : vector<16x1xf32> to vector<16x16xf32>
    %49 = arith.mulf %44, %48 : vector<16x16xf32>
    %cst_21 = arith.constant dense<0.000000e+00> : vector<16x8xf32>
    %50 = tpu.matmul %49, %37, %cst_21 {dimension_numbers = #tpu.dot_dimension_numbers<[1], [0], [0], [1], [0, 0, 1, 1], [], []>} : vector<16x16xf32>, vector<16x8xf32>, vector<16x8xf32> -> vector<16x8xf32>
    %c8 = arith.constant 8 : index
    %c0_22 = arith.constant 0 : index
    %51 = vector.load %arg6[%c8, %c0_22] : memref<32x32xf32, #tpu.memory_space<vmem>>, vector<8x32xf32>
    %cst_23 = arith.constant dense<0.000000e+00> : vector<16x32xf32>
    %52 = tpu.matmul %50, %51, %cst_23 {dimension_numbers = #tpu.dot_dimension_numbers<[1], [0], [0], [1], [0, 0, 1, 1], [], []>} : vector<16x8xf32>, vector<8x32xf32>, vector<16x32xf32> -> vector<16x32xf32>
    %53 = arith.addf %34, %52 : vector<16x32xf32>
    %54 = vector.extract_strided_slice %11 {offsets = [0, 16], sizes = [16, 8], strides = [1, 1]} : vector<16x32xf32> to vector<16x8xf32>
    %55 = vector.extract_strided_slice %12 {offsets = [0, 16], sizes = [16, 8], strides = [1, 1]} : vector<16x32xf32> to vector<16x8xf32>
    %56 = vector.extract_strided_slice %13 {offsets = [0, 16], sizes = [16, 8], strides = [1, 1]} : vector<16x32xf32> to vector<16x8xf32>
    %cst_24 = arith.constant dense<0.000000e+00> : vector<16x16xf32>
    %57 = tpu.matmul %54, %55, %cst_24 {dimension_numbers = #tpu.dot_dimension_numbers<[1], [1], [0], [0], [0, 0, 1, 0], [], []>} : vector<16x8xf32>, vector<16x8xf32>, vector<16x16xf32> -> vector<16x16xf32>
    %58 = arith.addf %57, %14 : vector<16x16xf32>
    %cst_25 = arith.constant dense<0xFF800000> : vector<16xf32>
    %59 = vector.multi_reduction <maximumf>, %58, %cst_25 [1] : vector<16x16xf32> to vector<16xf32>
    %60 = vector.shape_cast %59 : vector<16xf32> to vector<16x1xf32>
    %61 = vector.broadcast %60 : vector<16x1xf32> to vector<16x16xf32>
    %62 = arith.subf %58, %61 : vector<16x16xf32>
    %63 = math.exp %62 : vector<16x16xf32>
    %cst_26 = arith.constant dense<0.000000e+00> : vector<16xf32>
    %64 = vector.multi_reduction <add>, %63, %cst_26 [1] : vector<16x16xf32> to vector<16xf32>
    %65 = vector.shape_cast %64 : vector<16xf32> to vector<16x1xf32>
    %66 = tpu.reciprocal %65 {approx = true} : vector<16x1xf32> -> vector<16x1xf32>
    %67 = vector.broadcast %66 : vector<16x1xf32> to vector<16x16xf32>
    %68 = arith.mulf %63, %67 : vector<16x16xf32>
    %cst_27 = arith.constant dense<0.000000e+00> : vector<16x8xf32>
    %69 = tpu.matmul %68, %56, %cst_27 {dimension_numbers = #tpu.dot_dimension_numbers<[1], [0], [0], [1], [0, 0, 1, 1], [], []>} : vector<16x16xf32>, vector<16x8xf32>, vector<16x8xf32> -> vector<16x8xf32>
    %c16 = arith.constant 16 : index
    %c0_28 = arith.constant 0 : index
    %70 = vector.load %arg6[%c16, %c0_28] : memref<32x32xf32, #tpu.memory_space<vmem>>, vector<8x32xf32>
    %cst_29 = arith.constant dense<0.000000e+00> : vector<16x32xf32>
    %71 = tpu.matmul %69, %70, %cst_29 {dimension_numbers = #tpu.dot_dimension_numbers<[1], [0], [0], [1], [0, 0, 1, 1], [], []>} : vector<16x8xf32>, vector<8x32xf32>, vector<16x32xf32> -> vector<16x32xf32>
    %72 = arith.addf %53, %71 : vector<16x32xf32>
    %73 = vector.extract_strided_slice %11 {offsets = [0, 24], sizes = [16, 8], strides = [1, 1]} : vector<16x32xf32> to vector<16x8xf32>
    %74 = vector.extract_strided_slice %12 {offsets = [0, 24], sizes = [16, 8], strides = [1, 1]} : vector<16x32xf32> to vector<16x8xf32>
    %75 = vector.extract_strided_slice %13 {offsets = [0, 24], sizes = [16, 8], strides = [1, 1]} : vector<16x32xf32> to vector<16x8xf32>
    %cst_30 = arith.constant dense<0.000000e+00> : vector<16x16xf32>
    %76 = tpu.matmul %73, %74, %cst_30 {dimension_numbers = #tpu.dot_dimension_numbers<[1], [1], [0], [0], [0, 0, 1, 0], [], []>} : vector<16x8xf32>, vector<16x8xf32>, vector<16x16xf32> -> vector<16x16xf32>
    %77 = arith.addf %76, %14 : vector<16x16xf32>
    %cst_31 = arith.constant dense<0xFF800000> : vector<16xf32>
    %78 = vector.multi_reduction <maximumf>, %77, %cst_31 [1] : vector<16x16xf32> to vector<16xf32>
    %79 = vector.shape_cast %78 : vector<16xf32> to vector<16x1xf32>
    %80 = vector.broadcast %79 : vector<16x1xf32> to vector<16x16xf32>
    %81 = arith.subf %77, %80 : vector<16x16xf32>
    %82 = math.exp %81 : vector<16x16xf32>
    %cst_32 = arith.constant dense<0.000000e+00> : vector<16xf32>
    %83 = vector.multi_reduction <add>, %82, %cst_32 [1] : vector<16x16xf32> to vector<16xf32>
    %84 = vector.shape_cast %83 : vector<16xf32> to vector<16x1xf32>
    %85 = tpu.reciprocal %84 {approx = true} : vector<16x1xf32> -> vector<16x1xf32>
    %86 = vector.broadcast %85 : vector<16x1xf32> to vector<16x16xf32>
    %87 = arith.mulf %82, %86 : vector<16x16xf32>
    %cst_33 = arith.constant dense<0.000000e+00> : vector<16x8xf32>
    %88 = tpu.matmul %87, %75, %cst_33 {dimension_numbers = #tpu.dot_dimension_numbers<[1], [0], [0], [1], [0, 0, 1, 1], [], []>} : vector<16x16xf32>, vector<16x8xf32>, vector<16x8xf32> -> vector<16x8xf32>
    %c24 = arith.constant 24 : index
    %c0_34 = arith.constant 0 : index
    %89 = vector.load %arg6[%c24, %c0_34] : memref<32x32xf32, #tpu.memory_space<vmem>>, vector<8x32xf32>
    %cst_35 = arith.constant dense<0.000000e+00> : vector<16x32xf32>
    %90 = tpu.matmul %88, %89, %cst_35 {dimension_numbers = #tpu.dot_dimension_numbers<[1], [0], [0], [1], [0, 0, 1, 1], [], []>} : vector<16x8xf32>, vector<8x32xf32>, vector<16x32xf32> -> vector<16x32xf32>
    %91 = arith.addf %72, %90 : vector<16x32xf32>
    %c0_36 = arith.constant 0 : index
    %c0_37 = arith.constant 0 : index
    %92 = vector.load %arg7[%c0_36, %c0_37] : memref<1x32xf32, #tpu.memory_space<vmem>>, vector<1x32xf32>
    %93 = vector.broadcast %92 : vector<1x32xf32> to vector<16x32xf32>
    %94 = arith.addf %91, %93 : vector<16x32xf32>
    %95 = arith.addf %0, %94 : vector<16x32xf32>
    %c0_38 = arith.constant 0 : index
    %c0_39 = arith.constant 0 : index
    %96 = vector.load %arg8[%c0_38, %c0_39] : memref<1x32xf32, #tpu.memory_space<vmem>>, vector<1x32xf32>
    %c0_40 = arith.constant 0 : index
    %c0_41 = arith.constant 0 : index
    %97 = vector.load %arg9[%c0_40, %c0_41] : memref<1x32xf32, #tpu.memory_space<vmem>>, vector<1x32xf32>
    %cst_42 = arith.constant dense<0.000000e+00> : vector<16xf32>
    %98 = vector.multi_reduction <add>, %95, %cst_42 [1] : vector<16x32xf32> to vector<16xf32>
    %99 = vector.shape_cast %98 : vector<16xf32> to vector<16x1xf32>
    %cst_43 = arith.constant 3.200000e+01 : f32
    %100 = vector.broadcast %cst_43 : f32 to vector<16x1xf32>
    %101 = arith.divf %99, %100 : vector<16x1xf32>
    %102 = vector.broadcast %101 : vector<16x1xf32> to vector<16x32xf32>
    %103 = arith.subf %95, %102 : vector<16x32xf32>
    %104 = arith.mulf %103, %103 : vector<16x32xf32>
    %cst_44 = arith.constant dense<0.000000e+00> : vector<16xf32>
    %105 = vector.multi_reduction <add>, %104, %cst_44 [1] : vector<16x32xf32> to vector<16xf32>
    %106 = vector.shape_cast %105 : vector<16xf32> to vector<16x1xf32>
    %cst_45 = arith.constant 3.200000e+01 : f32
    %107 = vector.broadcast %cst_45 : f32 to vector<16x1xf32>
    %108 = arith.divf %106, %107 : vector<16x1xf32>
    %cst_46 = arith.constant 9.99999974E-6 : f32
    %109 = vector.broadcast %cst_46 : f32 to vector<16x1xf32>
    %110 = arith.addf %108, %109 : vector<16x1xf32>
    %111 = math.rsqrt %110 : vector<16x1xf32>
    %112 = vector.broadcast %111 : vector<16x1xf32> to vector<16x32xf32>
    %113 = arith.mulf %103, %112 : vector<16x32xf32>
    %114 = vector.broadcast %96 : vector<1x32xf32> to vector<16x32xf32>
    %115 = arith.mulf %113, %114 : vector<16x32xf32>
    %116 = vector.broadcast %97 : vector<1x32xf32> to vector<16x32xf32>
    %117 = arith.addf %115, %116 : vector<16x32xf32>
    %c0_47 = arith.constant 0 : index
    %c0_48 = arith.constant 0 : index
    %118 = vector.load %arg10[%c0_47, %c0_48] : memref<32x64xf32, #tpu.memory_space<vmem>>, vector<32x64xf32>
    %cst_49 = arith.constant dense<0.000000e+00> : vector<16x64xf32>
    %119 = tpu.matmul %117, %118, %cst_49 {dimension_numbers = #tpu.dot_dimension_numbers<[1], [0], [0], [1], [0, 0, 1, 1], [], []>} : vector<16x32xf32>, vector<32x64xf32>, vector<16x64xf32> -> vector<16x64xf32>
    %c0_50 = arith.constant 0 : index
    %c0_51 = arith.constant 0 : index
    %120 = vector.load %arg11[%c0_50, %c0_51] : memref<1x64xf32, #tpu.memory_space<vmem>>, vector<1x64xf32>
    %121 = vector.broadcast %120 : vector<1x64xf32> to vector<16x64xf32>
    %122 = arith.addf %119, %121 : vector<16x64xf32>
    %cst_52 = arith.constant 0.000000e+00 : f32
    %123 = vector.broadcast %cst_52 : f32 to vector<16x64xf32>
    %124 = arith.maximumf %122, %123 : vector<16x64xf32>
    %c0_53 = arith.constant 0 : index
    %c0_54 = arith.constant 0 : index
    %125 = vector.load %arg12[%c0_53, %c0_54] : memref<64x32xf32, #tpu.memory_space<vmem>>, vector<64x32xf32>
    %cst_55 = arith.constant dense<0.000000e+00> : vector<16x32xf32>
    %126 = tpu.matmul %124, %125, %cst_55 {dimension_numbers = #tpu.dot_dimension_numbers<[1], [0], [0], [1], [0, 0, 1, 1], [], []>} : vector<16x64xf32>, vector<64x32xf32>, vector<16x32xf32> -> vector<16x32xf32>
    %c0_56 = arith.constant 0 : index
    %c0_57 = arith.constant 0 : index
    %127 = vector.load %arg13[%c0_56, %c0_57] : memref<1x32xf32, #tpu.memory_space<vmem>>, vector<1x32xf32>
    %128 = vector.broadcast %127 : vector<1x32xf32> to vector<16x32xf32>
    %129 = arith.addf %126, %128 : vector<16x32xf32>
    %130 = arith.addf %117, %129 : vector<16x32xf32>
    %c0_58 = arith.constant 0 : index
    %c0_59 = arith.constant 0 : index
    %131 = vector.load %arg14[%c0_58, %c0_59] : memref<1x32xf32, #tpu.memory_space<vmem>>, vector<1x32xf32>
    %c0_60 = arith.constant 0 : index
    %c0_61 = arith.constant 0 : index
    %132 = vector.load %arg15[%c0_60, %c0_61] : memref<1x32xf32, #tpu.memory_space<vmem>>, vector<1x32xf32>
    %cst_62 = arith.constant dense<0.000000e+00> : vector<16xf32>
    %133 = vector.multi_reduction <add>, %130, %cst_62 [1] : vector<16x32xf32> to vector<16xf32>
    %134 = vector.shape_cast %133 : vector<16xf32> to vector<16x1xf32>
    %cst_63 = arith.constant 3.200000e+01 : f32
    %135 = vector.broadcast %cst_63 : f32 to vector<16x1xf32>
    %136 = arith.divf %134, %135 : vector<16x1xf32>
    %137 = vector.broadcast %136 : vector<16x1xf32> to vector<16x32xf32>
    %138 = arith.subf %130, %137 : vector<16x32xf32>
    %139 = arith.mulf %138, %138 : vector<16x32xf32>
    %cst_64 = arith.constant dense<0.000000e+00> : vector<16xf32>
    %140 = vector.multi_reduction <add>, %139, %cst_64 [1] : vector<16x32xf32> to vector<16xf32>
    %141 = vector.shape_cast %140 : vector<16xf32> to vector<16x1xf32>
    %cst_65 = arith.constant 3.200000e+01 : f32
    %142 = vector.broadcast %cst_65 : f32 to vector<16x1xf32>
    %143 = arith.divf %141, %142 : vector<16x1xf32>
    %cst_66 = arith.constant 9.99999974E-6 : f32
    %144 = vector.broadcast %cst_66 : f32 to vector<16x1xf32>
    %145 = arith.addf %143, %144 : vector<16x1xf32>
    %146 = math.rsqrt %145 : vector<16x1xf32>
    %147 = vector.broadcast %146 : vector<16x1xf32> to vector<16x32xf32>
    %148 = arith.mulf %138, %147 : vector<16x32xf32>
    %149 = vector.broadcast %131 : vector<1x32xf32> to vector<16x32xf32>
    %150 = arith.mulf %148, %149 : vector<16x32xf32>
    %151 = vector.broadcast %132 : vector<1x32xf32> to vector<16x32xf32>
    %152 = arith.addf %150, %151 : vector<16x32xf32>
    %c0_67 = arith.constant 0 : index
    %c0_68 = arith.constant 0 : index
    %153 = vector.load %arg16[%c0_67, %c0_68] : memref<16x32xf32, #tpu.memory_space<vmem>>, vector<16x32xf32>
    tpu.vector_store %arg16[%c0_67, %c0_68], %152 {strides = array<i32>} : memref<16x32xf32, #tpu.memory_space<vmem>>, vector<16x32xf32>,
    return
  }
  func.func @transform_0(%arg0: i32) -> (i32, i32) {
    %c0_i32 = arith.constant 0 : i32
    %c0_i32_0 = arith.constant 0 : i32
    %c0_i32_1 = arith.constant 0 : i32
    return %c0_i32, %c0_i32_0 : i32, i32
  }
  func.func @transform_1(%arg0: i32) -> (i32, i32) {
    %c0_i32 = arith.constant 0 : i32
    %c0_i32_0 = arith.constant 0 : i32
    %c0_i32_1 = arith.constant 0 : i32
    return %c0_i32, %c0_i32_0 : i32, i32
  }
  func.func @transform_2(%arg0: i32) -> (i32, i32) {
    %c0_i32 = arith.constant 0 : i32
    %c0_i32_0 = arith.constant 0 : i32
    %c0_i32_1 = arith.constant 0 : i32
    return %c0_i32, %c0_i32_0 : i32, i32
  }
  func.func @transform_3(%arg0: i32) -> (i32, i32) {
    %c0_i32 = arith.constant 0 : i32
    %c0_i32_0 = arith.constant 0 : i32
    %c0_i32_1 = arith.constant 0 : i32
    return %c0_i32, %c0_i32_0 : i32, i32
  }
  func.func @transform_4(%arg0: i32) -> (i32, i32) {
    %c0_i32 = arith.constant 0 : i32
    %c0_i32_0 = arith.constant 0 : i32
    %c0_i32_1 = arith.constant 0 : i32
    return %c0_i32, %c0_i32_0 : i32, i32
  }
  func.func @transform_5(%arg0: i32) -> (i32, i32) {
    %c0_i32 = arith.constant 0 : i32
    %c0_i32_0 = arith.constant 0 : i32
    %c0_i32_1 = arith.constant 0 : i32
    return %c0_i32, %c0_i32_0 : i32, i32
  }
  func.func @transform_6(%arg0: i32) -> (i32, i32) {
    %c0_i32 = arith.constant 0 : i32
    %c0_i32_0 = arith.constant 0 : i32
    %c0_i32_1 = arith.constant 0 : i32
    return %c0_i32, %c0_i32_0 : i32, i32
  }
  func.func @transform_7(%arg0: i32) -> (i32, i32) {
    %c0_i32 = arith.constant 0 : i32
    %c0_i32_0 = arith.constant 0 : i32
    %c0_i32_1 = arith.constant 0 : i32
    return %c0_i32, %c0_i32_0 : i32, i32
  }
  func.func @transform_8(%arg0: i32) -> (i32, i32) {
    %c0_i32 = arith.constant 0 : i32
    %c0_i32_0 = arith.constant 0 : i32
    %c0_i32_1 = arith.constant 0 : i32
    return %c0_i32, %c0_i32_0 : i32, i32
  }
  func.func @transform_9(%arg0: i32) -> (i32, i32) {
    %c0_i32 = arith.constant 0 : i32
    %c0_i32_0 = arith.constant 0 : i32
    %c0_i32_1 = arith.constant 0 : i32
    return %c0_i32, %c0_i32_0 : i32, i32
  }
  func.func @transform_10(%arg0: i32) -> (i32, i32) {
    %c0_i32 = arith.constant 0 : i32
    %c0_i32_0 = arith.constant 0 : i32
    %c0_i32_1 = arith.constant 0 : i32
    return %c0_i32, %c0_i32_0 : i32, i32
  }
  func.func @transform_11(%arg0: i32) -> (i32, i32) {
    %c0_i32 = arith.constant 0 : i32
    %c0_i32_0 = arith.constant 0 : i32
    %c0_i32_1 = arith.constant 0 : i32
    return %c0_i32, %c0_i32_0 : i32, i32
  }
  func.func @transform_12(%arg0: i32) -> (i32, i32) {
    %c0_i32 = arith.constant 0 : i32
    %c0_i32_0 = arith.constant 0 : i32
    %c0_i32_1 = arith.constant 0 : i32
    return %c0_i32, %c0_i32_0 : i32, i32
  }
  func.func @transform_13(%arg0: i32) -> (i32, i32) {
    %c0_i32 = arith.constant 0 : i32
    %c0_i32_0 = arith.constant 0 : i32
    %c0_i32_1 = arith.constant 0 : i32
    return %c0_i32, %c0_i32_0 : i32, i32
  }
  func.func @transform_14(%arg0: i32) -> (i32, i32) {
    %c0_i32 = arith.constant 0 : i32
    %c0_i32_0 = arith.constant 0 : i32
    %c0_i32_1 = arith.constant 0 : i32
    return %c0_i32, %c0_i32_0 : i32, i32
  }
  func.func @transform_15(%arg0: i32) -> (i32, i32) {
    %c0_i32 = arith.constant 0 : i32
    %c0_i32_0 = arith.constant 0 : i32
    %c0_i32_1 = arith.constant 0 : i32
    return %c0_i32, %c0_i32_0 : i32, i32
  }
}

</mosaic_0001>

<llo_original>
// kernel: tpu_custom_call.1
$region0: #{tpu_custom_call.1}
  #allocation0 [shape = 'u32[]', space=smem, size = 0x4, offset = 0x4, fixed_abs, tag = 'smem constant byte address 0x4 - core index']
  #allocation1 [shape = 'u32[144,128]{1,0:T(1,128)}', space=vmem, size = 0x12000, scoped, tag = 'internal scratch']
  %s0 = inlined_call_operand.hbm [shape: f32[16,32], index: 0, kind: input, shape index: {}]
  %s1 = inlined_call_operand.hbm [shape: f32[16,32], index: 1, kind: input, shape index: {}]
  %s2 = inlined_call_operand.hbm [shape: f32[16,16], index: 2, kind: input, shape index: {}]
  %s3 = inlined_call_operand.vmem [shape: f32[32,96], index: 3, kind: input, shape index: {}]
  %s4 = inlined_call_operand.vmem [shape: f32[1,96], index: 4, kind: input, shape index: {}]
  %s5 = inlined_call_operand.vmem [shape: f32[32,32], index: 5, kind: input, shape index: {}]
  %s6 = inlined_call_operand.vmem [shape: f32[1,32], index: 6, kind: input, shape index: {}]
  %s7 = inlined_call_operand.vmem [shape: f32[1,32], index: 7, kind: input, shape index: {}]
  %s8 = inlined_call_operand.vmem [shape: f32[1,32], index: 8, kind: input, shape index: {}]
  %s9 = inlined_call_operand.vmem [shape: f32[32,64], index: 9, kind: input, shape index: {}]
  %s10 = inlined_call_operand.vmem [shape: f32[1,64], index: 10, kind: input, shape index: {}]
  %s11 = inlined_call_operand.vmem [shape: f32[64,32], index: 11, kind: input, shape index: {}]
  %s12 = inlined_call_operand.vmem [shape: f32[1,32], index: 12, kind: input, shape index: {}]
  %s13 = inlined_call_operand.vmem [shape: f32[1,32], index: 13, kind: input, shape index: {}]
  %s14 = inlined_call_operand.vmem [shape: f32[1,32], index: 14, kind: input, shape index: {}]
  %s15 = inlined_call_operand.hbm [shape: f32[16,32], index: 15, kind: output, shape index: {}]
  %s16 = sld [smem:[#allocation0]]
  $region82: #{tpu_custom_call.1} parent=0
    _
  %s18 = ssub.s32 1, %s16
  %s19 = scalar_select 0, %s18, %s16
  $region1: #{tpu_custom_call.1} parent=0
    #allocation2 [shape = 'u8[8192]{0}', space=vmem, size = 0x2000, scoped, tag = 'input window, operand 0, single buffered']
    #allocation3 [shape = 's32[1]{0}', space=sflag, size = 0x4, scoped, tag = 'scoped memory for tpu_custom_call.1']
    #allocation4 [shape = 's32[1]{0}', space=sflag, size = 0x4, scoped, tag = 'scoped memory for tpu_custom_call.1']
    #allocation5 [shape = 'u8[8192]{0}', space=vmem, size = 0x2000, scoped, tag = 'input window, operand 1, single buffered']
    #allocation6 [shape = 's32[1]{0}', space=sflag, size = 0x4, scoped, tag = 'scoped memory for tpu_custom_call.1']
    #allocation7 [shape = 'u8[8192]{0}', space=vmem, size = 0x2000, scoped, tag = 'input window, operand 2, single buffered']
    #allocation8 [shape = 'u8[8192]{0}', space=vmem, size = 0x2000, scoped, tag = 'output window, operand 0, single buffered']
    %20 = vsyncpa [#allocation3], 0
    %21 = vsyncpa [#allocation6], 0
    %22 = vsyncpa [#allocation4], 0
    // Predicated region
    $region2: #{tpu_custom_call.1} parent=1 // pred_check
      _
    $region3: #{tpu_custom_call.1} parent=1 // pred_check_branch
      %24 = sbr.rel (0) target = $region5
    $region4: #{tpu_custom_call.1} parent=1 // pred_region
      %s26 = ssub.s32 256, 256
      %27 = vsyncadd [#allocation3], %s26
      %s28 = sshll.u32 [#allocation2], 4
      %s29 = int_to_ptr.vmem [resolvable:$true] %s28
      %34 = dma.hbm_to_vmem [thread:$0]  %s0, 256, %s29, [#allocation3], 128, 128, 8
    $region5: #{tpu_custom_call.1} parent=1 // pred_fallthru
      _
    // Predicated region
    $region6: #{tpu_custom_call.1} parent=1 // pred_check
      _
    $region7: #{tpu_custom_call.1} parent=1 // pred_check_branch
      %36 = sbr.rel (0) target = $region9
    $region8: #{tpu_custom_call.1} parent=1 // pred_region
      %s38 = ssub.s32 256, 256
      %39 = vsyncadd [#allocation6], %s38
      %s40 = sshll.u32 [#allocation5], 4
      %s41 = int_to_ptr.vmem [resolvable:$true] %s40
      %46 = dma.hbm_to_vmem [thread:$0]  %s1, 256, %s41, [#allocation6], 128, 128, 8
    $region9: #{tpu_custom_call.1} parent=1 // pred_fallthru
      _
    // Predicated region
    $region10: #{tpu_custom_call.1} parent=1 // pred_check
      _
    $region11: #{tpu_custom_call.1} parent=1 // pred_check_branch
      %48 = sbr.rel (0) target = $region13
    $region12: #{tpu_custom_call.1} parent=1 // pred_region
      %s50 = ssub.s32 256, 256
      %51 = vsyncadd [#allocation6], %s50
      %s52 = sshll.u32 [#allocation7], 4
      %s53 = int_to_ptr.vmem [resolvable:$true] %s52
      %58 = dma.hbm_to_vmem [thread:$0]  %s2, 256, %s53, [#allocation6], 128, 128, 8
    $region13: #{tpu_custom_call.1} parent=1 // pred_fallthru
      _
    // Predicated region
    $region14: #{tpu_custom_call.1} parent=1 // pred_check
      _
    $region15: #{tpu_custom_call.1} parent=1 // pred_check_branch
      %60 = sbr.rel (0) target = $region17
    $region16: #{tpu_custom_call.1} parent=1 // pred_region
      _
    $region17: #{tpu_custom_call.1} parent=1 // pred_fallthru
      _
    // Predicated region
    $region18: #{tpu_custom_call.1} parent=1 // pred_check
      _
    $region19: #{tpu_custom_call.1} parent=1 // pred_check_branch
      %62 = sbr.rel (0) target = $region21
    $region20: #{tpu_custom_call.1} parent=1 // pred_region
      _
    $region21: #{tpu_custom_call.1} parent=1 // pred_fallthru
      _
    // Predicated region
    $region22: #{tpu_custom_call.1} parent=1 // pred_check
      _
    $region23: #{tpu_custom_call.1} parent=1 // pred_check_branch
      %64 = sbr.rel (0) target = $region25
    $region24: #{tpu_custom_call.1} parent=1 // pred_region
      _
    $region25: #{tpu_custom_call.1} parent=1 // pred_fallthru
      _
    // Predicated region
    $region26: #{tpu_custom_call.1} parent=1 // pred_check
      _
    $region27: #{tpu_custom_call.1} parent=1 // pred_check_branch
      %66 = sbr.rel (0) target = $region29
    $region28: #{tpu_custom_call.1} parent=1 // pred_region
      _
    $region29: #{tpu_custom_call.1} parent=1 // pred_fallthru
      _
    // Predicated region
    $region30: #{tpu_custom_call.1} parent=1 // pred_check
      _
    $region31: #{tpu_custom_call.1} parent=1 // pred_check_branch
      %68 = sbr.rel (0) target = $region33
    $region32: #{tpu_custom_call.1} parent=1 // pred_region
      _
    $region33: #{tpu_custom_call.1} parent=1 // pred_fallthru
      _
    // Predicated region
    $region34: #{tpu_custom_call.1} parent=1 // pred_check
      _
    $region35: #{tpu_custom_call.1} parent=1 // pred_check_branch
      %70 = sbr.rel (0) target = $region37
    $region36: #{tpu_custom_call.1} parent=1 // pred_region
      _
    $region37: #{tpu_custom_call.1} parent=1 // pred_fallthru
      _
    // Predicated region
    $region38: #{tpu_custom_call.1} parent=1 // pred_check
      _
    $region39: #{tpu_custom_call.1} parent=1 // pred_check_branch
      %72 = sbr.rel (0) target = $region41
    $region40: #{tpu_custom_call.1} parent=1 // pred_region
      _
    $region41: #{tpu_custom_call.1} parent=1 // pred_fallthru
      _
    // Predicated region
    $region42: #{tpu_custom_call.1} parent=1 // pred_check
      _
    $region43: #{tpu_custom_call.1} parent=1 // pred_check_branch
      %74 = sbr.rel (0) target = $region45
    $region44: #{tpu_custom_call.1} parent=1 // pred_region
      _
    $region45: #{tpu_custom_call.1} parent=1 // pred_fallthru
      _
    // Predicated region
    $region46: #{tpu_custom_call.1} parent=1 // pred_check
      _
    $region47: #{tpu_custom_call.1} parent=1 // pred_check_branch
      %76 = sbr.rel (0) target = $region49
    $region48: #{tpu_custom_call.1} parent=1 // pred_region
      _
    $region49: #{tpu_custom_call.1} parent=1 // pred_fallthru
      _
    // Predicated region
    $region50: #{tpu_custom_call.1} parent=1 // pred_check
      _
    $region51: #{tpu_custom_call.1} parent=1 // pred_check_branch
      %78 = sbr.rel (0) target = $region53
    $region52: #{tpu_custom_call.1} parent=1 // pred_region
      _
    $region53: #{tpu_custom_call.1} parent=1 // pred_fallthru
      _
    // Predicated region
    $region54: #{tpu_custom_call.1} parent=1 // pred_check
      _
    $region55: #{tpu_custom_call.1} parent=1 // pred_check_branch
      %80 = sbr.rel (0) target = $region57
    $region56: #{tpu_custom_call.1} parent=1 // pred_region
      _
    $region57: #{tpu_custom_call.1} parent=1 // pred_fallthru
      _
    // Predicated region
    $region58: #{tpu_custom_call.1} parent=1 // pred_check
      _
    $region59: #{tpu_custom_call.1} parent=1 // pred_check_branch
      %82 = sbr.rel (0) target = $region61
    $region60: #{tpu_custom_call.1} parent=1 // pred_region
      _
    $region61: #{tpu_custom_call.1} parent=1 // pred_fallthru
      _
    // Predicated region
    $region62: #{tpu_custom_call.1} parent=1 // pred_check
      _
    $region63: #{tpu_custom_call.1} parent=1 // pred_check_branch
      %84 = sbr.rel (0) target = $region65
    $region64: #{tpu_custom_call.1} parent=1 // pred_region
      %85 = dma.done [#allocation3], 256
    $region65: #{tpu_custom_call.1} parent=1 // pred_fallthru
      _
    // Predicated region
    $region66: #{tpu_custom_call.1} parent=1 // pred_check
      _
    $region67: #{tpu_custom_call.1} parent=1 // pred_check_branch
      %87 = sbr.rel (0) target = $region69
    $region68: #{tpu_custom_call.1} parent=1 // pred_region
      %88 = dma.done [#allocation6], 256
    $region69: #{tpu_custom_call.1} parent=1 // pred_fallthru
      _
    // Predicated region
    $region70: #{tpu_custom_call.1} parent=1 // pred_check
      _
    $region71: #{tpu_custom_call.1} parent=1 // pred_check_branch
      %90 = sbr.rel (0) target = $region73
    $region72: #{tpu_custom_call.1} parent=1 // pred_region
      %91 = dma.done [#allocation6], 256
    $region73: #{tpu_custom_call.1} parent=1 // pred_fallthru
      _
    %v92 = vld [vmem:[#allocation2] sm:$0xff]
    %v93 = vld [vmem:[#allocation2 + $0x8] sm:$0xff]
    %v94 = vld [vmem:[#allocation5] sm:$0xff]
    %v95 = vld [vmem:[#allocation5 + $0x8] sm:$0xff]
    %v96 = vadd.f32 %v92, %v94
    %v97 = vadd.f32 %v93, %v95
    %v98 = vld [vmem:[%s3] sm:$0xff]
    %v99 = vld [vmem:[%s3 + $0x8] sm:$0xff]
    %v100 = vld [vmem:[%s3 + $0x10] sm:$0xff]
    %v101 = vld [vmem:[%s3 + $0x18] sm:$0xff]
    %v102 = vld [vmem:[%s4] sm:$0x1]
    %v104 = vlaneseq
    %v105 = vshrl.u32 %v104, 7
    %v106 = vsub.s32 0, %v105
    %v107 = vrot.slane %v102, %v106
    %vm109 = vcmask 261120
    %v111 = vsel %vm109, %v96, 0
    %v114 = vsel %vm109, %v97, 0
    %v117 = vsel %vm109, %v92, 0
    %v120 = vsel %vm109, %v93, 0
    %122 = vmatprep.subr.mxu0 0.0
    %123 = vmatpush1.msra.mxu0 0.0
    %124 = vmatprep.subr.mxu0 0.0
    %125 = vmatpush1.msra.mxu0 0.0
    %126 = vmatprep.subr.mxu0 0.0
    %127 = vmatpush1.msra.mxu0 0.0
    %128 = vmatprep.subr.mxu0 0.0
    %129 = vmatpush1.msra.mxu0 0.0
    %130 = vmatprep.subr.mxu0 0.0
    %131 = vmatpush1.msra.mxu0 0.0
    %132 = vmatprep.subr.mxu0 0.0
    %133 = vmatpush1.msra.mxu0 0.0
    %134 = vmatprep.subr.mxu0 0.0
    %135 = vmatpush1.msra.mxu0 0.0
    %136 = vmatprep.subr.mxu0 0.0
    %137 = vmatpush1.msra.mxu0 0.0
    %138 = vmatprep.subr.mxu0 0.0
    %139 = vmatpush1.msra.mxu0 0.0
    %140 = vmatprep.subr.mxu0 0.0
    %141 = vmatpush1.msra.mxu0 0.0
    %142 = vmatprep.subr.mxu0 0.0
    %143 = vmatpush1.msra.mxu0 0.0
    %144 = vmatprep.subr.mxu0 0.0
    %145 = vmatpush1.msra.mxu0 0.0
    %146 = vmatprep.subr.mxu0 0.0
    %147 = vmatpush1.msra.mxu0 %v101
    %148 = vmatprep.subr.mxu0 0.0
    %149 = vmatpush1.msra.mxu0 %v100
    %150 = vmatprep.subr.mxu0 0.0
    %151 = vmatpush1.msra.mxu0 %v99
    %152 = vmatprep.subr.mxu0 0.0
    %153 = vmatpush1.msra.mxu0 %v98
    %154 = vmatprep.subr.mxu0 0.0
    %155 = vmatpush2.msra.mxu0 0.0
    %156 = vmatprep.subr.mxu0 0.0
    %157 = vmatpush2.msra.mxu0 0.0
    %158 = vmatprep.subr.mxu0 0.0
    %159 = vmatpush2.msra.mxu0 0.0
    %160 = vmatprep.subr.mxu0 0.0
    %161 = vmatpush2.msra.mxu0 0.0
    %162 = vmatprep.subr.mxu0 0.0
    %163 = vmatpush2.msra.mxu0 0.0
    %164 = vmatprep.subr.mxu0 0.0
    %165 = vmatpush2.msra.mxu0 0.0
    %166 = vmatprep.subr.mxu0 0.0
    %167 = vmatpush2.msra.mxu0 0.0
    %168 = vmatprep.subr.mxu0 0.0
    %169 = vmatpush2.msra.mxu0 0.0
    %170 = vmatprep.subr.mxu0 0.0
    %171 = vmatpush2.msra.mxu0 0.0
    %172 = vmatprep.subr.mxu0 0.0
    %173 = vmatpush2.msra.mxu0 0.0
    %174 = vmatprep.subr.mxu0 0.0
    %175 = vmatpush2.msra.mxu0 0.0
    %176 = vmatprep.subr.mxu0 0.0
    %177 = vmatpush2.msra.mxu0 0.0
    %178 = vmatprep.subr.mxu0 0.0
    %179 = vmatpush2.msra.mxu0 0.0
    %180 = vmatprep.subr.mxu0 0.0
    %181 = vmatpush2.msra.mxu0 0.0
    %182 = vmatprep.subr.mxu0 0.0
    %183 = vmatpush2.msra.mxu0 0.0
    %184 = vmatprep.subr.mxu0 0.0
    %185 = vmatpush2.msra.mxu0 0.0
    %186 = vmatprep.mubr.f32.mxu0 0.0
    %187 = vmatmul.mubr.f32.gmra.mxu0 %v111
    %v188 = vpop.f32.mrf.mxu0
    %v189 = vadd.f32 %v107, %v188
    %v190 = vpop.f32.mrf.mxu0
    %191 = vmatprep.mubr.f32.mxu0 0.0
    %192 = vmatmul.mubr.f32.gmra.mxu0 %v114
    %v193 = vpop.f32.mrf.mxu0
    %v194 = vadd.f32 %v107, %v193
    %v195 = vpop.f32.mrf.mxu0
    %196 = vmatprep.mubr.f32.mxu0 0.0
    %197 = vmatmul.mubr.f32.gmra.mxu0 %v117
    %v198 = vpop.f32.mrf.mxu0
    %v199 = vadd.f32 %v107, %v198
    %v200 = vpop.f32.mrf.mxu0
    %201 = vmatprep.mubr.f32.mxu0 0.0
    %202 = vmatmul.mubr.f32.gmra.mxu0 %v120
    %v203 = vpop.f32.mrf.mxu0
    %v204 = vadd.f32 %v107, %v203
    %v205 = vpop.f32.mrf.mxu0
    %206 = vdwg.mxu0
    %v207 = vmul.f32 %v189, 0.35355338
    %v208 = vmul.f32 %v194, 0.35355338
    %v209 = vld [vmem:[#allocation7] sm:$0xff]
    %v210 = vld [vmem:[#allocation7 + $0x8] sm:$0xff]
    %213 = vrot.lane.b32.xlu0 %v189, 96
    %v214 = vpop.permute.xlu0 %213
    %215 = vrot.lane.b32.xlu0 %v194, 96
    %v216 = vpop.permute.xlu0 %215
    %vm217 = vcmask 64512
    %v219 = vsel %vm217, %v207, 0
    %v222 = vsel %vm217, %v208, 0
    %v224 = vsel %vm217, %v214, 0
    %v226 = vsel %vm217, %v216, 0
    %228 = vmatprep.subr.mxu0 0.0
    %229 = vmatpush1.xpose.msra.mxu0 0.0
    %230 = vmatprep.subr.mxu0 0.0
    %231 = vmatpush1.xpose.msra.mxu0 0.0
    %232 = vmatprep.subr.mxu0 0.0
    %233 = vmatpush1.xpose.msra.mxu0 0.0
    %234 = vmatprep.subr.mxu0 0.0
    %235 = vmatpush1.xpose.msra.mxu0 0.0
    %236 = vmatprep.subr.mxu0 0.0
    %237 = vmatpush1.xpose.msra.mxu0 0.0
    %238 = vmatprep.subr.mxu0 0.0
    %239 = vmatpush1.xpose.msra.mxu0 0.0
    %240 = vmatprep.subr.mxu0 0.0
    %241 = vmatpush1.xpose.msra.mxu0 0.0
    %242 = vmatprep.subr.mxu0 0.0
    %243 = vmatpush1.xpose.msra.mxu0 0.0
    %244 = vmatprep.subr.mxu0 0.0
    %245 = vmatpush1.xpose.msra.mxu0 0.0
    %246 = vmatprep.subr.mxu0 0.0
    %247 = vmatpush1.xpose.msra.mxu0 0.0
    %248 = vmatprep.subr.mxu0 0.0
    %249 = vmatpush1.xpose.msra.mxu0 0.0
    %250 = vmatprep.subr.mxu0 0.0
    %251 = vmatpush1.xpose.msra.mxu0 0.0
    %252 = vmatprep.subr.mxu0 0.0
    %253 = vmatpush1.xpose.msra.mxu0 0.0
    %254 = vmatprep.subr.mxu0 0.0
    %255 = vmatpush1.xpose.msra.mxu0 0.0
    %256 = vmatprep.subr.mxu0 0.0
    %257 = vmatpush1.xpose.msra.mxu0 %v226
    %258 = vmatprep.subr.mxu0 0.0
    %259 = vmatpush1.xpose.msra.mxu0 %v224
    %260 = vmatprep.subr.mxu0 0.0
    %261 = vmatpush2.xpose.msra.mxu0 0.0
    %262 = vmatprep.subr.mxu0 0.0
    %263 = vmatpush2.xpose.msra.mxu0 0.0
    %264 = vmatprep.subr.mxu0 0.0
    %265 = vmatpush2.xpose.msra.mxu0 0.0
    %266 = vmatprep.subr.mxu0 0.0
    %267 = vmatpush2.xpose.msra.mxu0 0.0
    %268 = vmatprep.subr.mxu0 0.0
    %269 = vmatpush2.xpose.msra.mxu0 0.0
    %270 = vmatprep.subr.mxu0 0.0
    %271 = vmatpush2.xpose.msra.mxu0 0.0
    %272 = vmatprep.subr.mxu0 0.0
    %273 = vmatpush2.xpose.msra.mxu0 0.0
    %274 = vmatprep.subr.mxu0 0.0
    %275 = vmatpush2.xpose.msra.mxu0 0.0
    %276 = vmatprep.subr.mxu0 0.0
    %277 = vmatpush2.xpose.msra.mxu0 0.0
    %278 = vmatprep.subr.mxu0 0.0
    %279 = vmatpush2.xpose.msra.mxu0 0.0
    %280 = vmatprep.subr.mxu0 0.0
    %281 = vmatpush2.xpose.msra.mxu0 0.0
    %282 = vmatprep.subr.mxu0 0.0
    %283 = vmatpush2.xpose.msra.mxu0 0.0
    %284 = vmatprep.subr.mxu0 0.0
    %285 = vmatpush2.xpose.msra.mxu0 0.0
    %286 = vmatprep.subr.mxu0 0.0
    %287 = vmatpush2.xpose.msra.mxu0 0.0
    %288 = vmatprep.subr.mxu0 0.0
    %289 = vmatpush2.xpose.msra.mxu0 0.0
    %290 = vmatprep.subr.mxu0 0.0
    %291 = vmatpush2.xpose.msra.mxu0 0.0
    %292 = vmatprep.mubr.f32.mxu0 0.0
    %293 = vmatmul.mubr.f32.gmra.mxu0 %v219
    %v294 = vpop.f32.mrf.mxu0
    %v295 = vadd.f32 %v209, %v294
    %v296 = vpop.f32.mrf.mxu0
    %297 = vmatprep.mubr.f32.mxu0 0.0
    %298 = vmatmul.mubr.f32.gmra.mxu0 %v222
    %v299 = vpop.f32.mrf.mxu0
    %v300 = vadd.f32 %v210, %v299
    %v301 = vpop.f32.mrf.mxu0
    %302 = vdwg.mxu0
    %vm303 = vcmask 130048
    %v304 = vsel %vm303, %v295, -inf
    %305 = vmax.xlane.f32.xlu0 %v304
    %v306 = vpop.xlane.xlu0 %305
    %v307 = vsel %vm303, %v300, -inf
    %308 = vmax.xlane.f32.xlu0 %v307
    %v309 = vpop.xlane.xlu0 %308
    %v310 = vsub.f32 %v295, %v306
    %v311 = vsub.f32 %v300, %v309
    %v312 = vmul.f32 %v310, 1.442695
    %v313 = vpow.pop %v312
    %v314 = vmul.f32 %v311, 1.442695
    %v315 = vpow.pop %v314
    %v316 = vsel %vm303, %v313, 0.0
    %317 = vadd.xlane.f32.xlu0 %v316
    %v318 = vpop.xlane.xlu0 %317
    %v319 = vsel %vm303, %v315, 0.0
    %320 = vadd.xlane.f32.xlu0 %v319
    %v321 = vpop.xlane.xlu0 %320
    %v322 = vrcp.pop %v318
    %v323 = vrcp.pop %v321
    %v324 = vmul.f32 %v313, %v322
    %v325 = vmul.f32 %v315, %v323
    %328 = vrot.lane.b32.xlu0 %v199, 64
    %v329 = vpop.permute.xlu0 %328
    %330 = vrot.lane.b32.xlu0 %v204, 64
    %v331 = vpop.permute.xlu0 %330
    %v335 = vsel %vm303, %v324, 0
    %v338 = vsel %vm303, %v325, 0
    %340 = vmatprep.subr.mxu0 0.0
    %341 = vmatpush1.msra.mxu0 0.0
    %342 = vmatprep.subr.mxu0 0.0
    %343 = vmatpush1.msra.mxu0 0.0
    %344 = vmatprep.subr.mxu0 0.0
    %345 = vmatpush1.msra.mxu0 0.0
    %346 = vmatprep.subr.mxu0 0.0
    %347 = vmatpush1.msra.mxu0 0.0
    %348 = vmatprep.subr.mxu0 0.0
    %349 = vmatpush1.msra.mxu0 0.0
    %350 = vmatprep.subr.mxu0 0.0
    %351 = vmatpush1.msra.mxu0 0.0
    %352 = vmatprep.subr.mxu0 0.0
    %353 = vmatpush1.msra.mxu0 0.0
    %354 = vmatprep.subr.mxu0 0.0
    %355 = vmatpush1.msra.mxu0 0.0
    %356 = vmatprep.subr.mxu0 0.0
    %357 = vmatpush1.msra.mxu0 0.0
    %358 = vmatprep.subr.mxu0 0.0
    %359 = vmatpush1.msra.mxu0 0.0
    %360 = vmatprep.subr.mxu0 0.0
    %361 = vmatpush1.msra.mxu0 0.0
    %362 = vmatprep.subr.mxu0 0.0
    %363 = vmatpush1.msra.mxu0 0.0
    %364 = vmatprep.subr.mxu0 0.0
    %365 = vmatpush1.msra.mxu0 0.0
    %366 = vmatprep.subr.mxu0 0.0
    %367 = vmatpush1.msra.mxu0 0.0
    %368 = vmatprep.subr.mxu0 0.0
    %369 = vmatpush1.msra.mxu0 %v331
    %370 = vmatprep.subr.mxu0 0.0
    %371 = vmatpush1.msra.mxu0 %v329
    %372 = vmatprep.subr.mxu0 0.0
    %373 = vmatpush2.msra.mxu0 0.0
    %374 = vmatprep.subr.mxu0 0.0
    %375 = vmatpush2.msra.mxu0 0.0
    %376 = vmatprep.subr.mxu0 0.0
    %377 = vmatpush2.msra.mxu0 0.0
    %378 = vmatprep.subr.mxu0 0.0
    %379 = vmatpush2.msra.mxu0 0.0
    %380 = vmatprep.subr.mxu0 0.0
    %381 = vmatpush2.msra.mxu0 0.0
    %382 = vmatprep.subr.mxu0 0.0
    %383 = vmatpush2.msra.mxu0 0.0
    %384 = vmatprep.subr.mxu0 0.0
    %385 = vmatpush2.msra.mxu0 0.0
    %386 = vmatprep.subr.mxu0 0.0
    %387 = vmatpush2.msra.mxu0 0.0
    %388 = vmatprep.subr.mxu0 0.0
    %389 = vmatpush2.msra.mxu0 0.0
    %390 = vmatprep.subr.mxu0 0.0
    %391 = vmatpush2.msra.mxu0 0.0
    %392 = vmatprep.subr.mxu0 0.0
    %393 = vmatpush2.msra.mxu0 0.0
    %394 = vmatprep.subr.mxu0 0.0
    %395 = vmatpush2.msra.mxu0 0.0
    %396 = vmatprep.subr.mxu0 0.0
    %397 = vmatpush2.msra.mxu0 0.0
    %398 = vmatprep.subr.mxu0 0.0
    %399 = vmatpush2.msra.mxu0 0.0
    %400 = vmatprep.subr.mxu0 0.0
    %401 = vmatpush2.msra.mxu0 0.0
    %402 = vmatprep.subr.mxu0 0.0
    %403 = vmatpush2.msra.mxu0 0.0
    %404 = vmatprep.mubr.f32.mxu0 0.0
    %405 = vmatmul.mubr.f32.gmra.mxu0 %v335
    %v406 = vpop.f32.mrf.mxu0
    %v407 = vadd.f32 0.0, %v406
    %v408 = vpop.f32.mrf.mxu0
    %409 = vmatprep.mubr.f32.mxu0 0.0
    %410 = vmatmul.mubr.f32.gmra.mxu0 %v338
    %v411 = vpop.f32.mrf.mxu0
    %v412 = vadd.f32 0.0, %v411
    %v413 = vpop.f32.mrf.mxu0
    %414 = vdwg.mxu0
    %v415 = vld [vmem:[%s5] sm:$0xff]
    %416 = vrot.lane.b32.xlu0 %v207, 120
    %v417 = vpop.permute.xlu0 %416
    %418 = vrot.lane.b32.xlu0 %v208, 120
    %v419 = vpop.permute.xlu0 %418
    %420 = vrot.lane.b32.xlu0 %v189, 88
    %v421 = vpop.permute.xlu0 %420
    %422 = vrot.lane.b32.xlu0 %v194, 88
    %v423 = vpop.permute.xlu0 %422
    %v424 = vsel %vm217, %v417, 0
    %v426 = vsel %vm217, %v419, 0
    %v428 = vsel %vm217, %v421, 0
    %v430 = vsel %vm217, %v423, 0
    %432 = vmatprep.subr.mxu0 0.0
    %433 = vmatpush1.xpose.msra.mxu0 0.0
    %434 = vmatprep.subr.mxu0 0.0
    %435 = vmatpush1.xpose.msra.mxu0 0.0
    %436 = vmatprep.subr.mxu0 0.0
    %437 = vmatpush1.xpose.msra.mxu0 0.0
    %438 = vmatprep.subr.mxu0 0.0
    %439 = vmatpush1.xpose.msra.mxu0 0.0
    %440 = vmatprep.subr.mxu0 0.0
    %441 = vmatpush1.xpose.msra.mxu0 0.0
    %442 = vmatprep.subr.mxu0 0.0
    %443 = vmatpush1.xpose.msra.mxu0 0.0
    %444 = vmatprep.subr.mxu0 0.0
    %445 = vmatpush1.xpose.msra.mxu0 0.0
    %446 = vmatprep.subr.mxu0 0.0
    %447 = vmatpush1.xpose.msra.mxu0 0.0
    %448 = vmatprep.subr.mxu0 0.0
    %449 = vmatpush1.xpose.msra.mxu0 0.0
    %450 = vmatprep.subr.mxu0 0.0
    %451 = vmatpush1.xpose.msra.mxu0 0.0
    %452 = vmatprep.subr.mxu0 0.0
    %453 = vmatpush1.xpose.msra.mxu0 0.0
    %454 = vmatprep.subr.mxu0 0.0
    %455 = vmatpush1.xpose.msra.mxu0 0.0
    %456 = vmatprep.subr.mxu0 0.0
    %457 = vmatpush1.xpose.msra.mxu0 0.0
    %458 = vmatprep.subr.mxu0 0.0
    %459 = vmatpush1.xpose.msra.mxu0 0.0
    %460 = vmatprep.subr.mxu0 0.0
    %461 = vmatpush1.xpose.msra.mxu0 %v430
    %462 = vmatprep.subr.mxu0 0.0
    %463 = vmatpush1.xpose.msra.mxu0 %v428
    %464 = vmatprep.subr.mxu0 0.0
    %465 = vmatpush2.xpose.msra.mxu0 0.0
    %466 = vmatprep.subr.mxu0 0.0
    %467 = vmatpush2.xpose.msra.mxu0 0.0
    %468 = vmatprep.subr.mxu0 0.0
    %469 = vmatpush2.xpose.msra.mxu0 0.0
    %470 = vmatprep.subr.mxu0 0.0
    %471 = vmatpush2.xpose.msra.mxu0 0.0
    %472 = vmatprep.subr.mxu0 0.0
    %473 = vmatpush2.xpose.msra.mxu0 0.0
    %474 = vmatprep.subr.mxu0 0.0
    %475 = vmatpush2.xpose.msra.mxu0 0.0
    %476 = vmatprep.subr.mxu0 0.0
    %477 = vmatpush2.xpose.msra.mxu0 0.0
    %478 = vmatprep.subr.mxu0 0.0
    %479 = vmatpush2.xpose.msra.mxu0 0.0
    %480 = vmatprep.subr.mxu0 0.0
    %481 = vmatpush2.xpose.msra.mxu0 0.0
    %482 = vmatprep.subr.mxu0 0.0
    %483 = vmatpush2.xpose.msra.mxu0 0.0
    %484 = vmatprep.subr.mxu0 0.0
    %485 = vmatpush2.xpose.msra.mxu0 0.0
    %486 = vmatprep.subr.mxu0 0.0
    %487 = vmatpush2.xpose.msra.mxu0 0.0
    %488 = vmatprep.subr.mxu0 0.0
    %489 = vmatpush2.xpose.msra.mxu0 0.0
    %490 = vmatprep.subr.mxu0 0.0
    %491 = vmatpush2.xpose.msra.mxu0 0.0
    %492 = vmatprep.subr.mxu0 0.0
    %493 = vmatpush2.xpose.msra.mxu0 0.0
    %494 = vmatprep.subr.mxu0 0.0
    %495 = vmatpush2.xpose.msra.mxu0 0.0
    %496 = vmatprep.mubr.f32.mxu0 0.0
    %497 = vmatmul.mubr.f32.gmra.mxu0 %v424
    %v498 = vpop.f32.mrf.mxu0
    %v499 = vadd.f32 %v209, %v498
    %v500 = vpop.f32.mrf.mxu0
    %501 = vmatprep.mubr.f32.mxu0 0.0
    %502 = vmatmul.mubr.f32.gmra.mxu0 %v426
    %v503 = vpop.f32.mrf.mxu0
    %v504 = vadd.f32 %v210, %v503
    %v505 = vpop.f32.mrf.mxu0
    %506 = vdwg.mxu0
    %v507 = vsel %vm303, %v499, -inf
    %508 = vmax.xlane.f32.xlu0 %v507
    %v509 = vpop.xlane.xlu0 %508
    %v510 = vsel %vm303, %v504, -inf
    %511 = vmax.xlane.f32.xlu0 %v510
    %v512 = vpop.xlane.xlu0 %511
    %v513 = vsub.f32 %v499, %v509
    %v514 = vsub.f32 %v504, %v512
    %v515 = vmul.f32 %v513, 1.442695
    %v516 = vpow.pop %v515
    %v517 = vmul.f32 %v514, 1.442695
    %v518 = vpow.pop %v517
    %v519 = vsel %vm303, %v516, 0.0
    %520 = vadd.xlane.f32.xlu0 %v519
    %v521 = vpop.xlane.xlu0 %520
    %v522 = vsel %vm303, %v518, 0.0
    %523 = vadd.xlane.f32.xlu0 %v522
    %v524 = vpop.xlane.xlu0 %523
    %v525 = vrcp.pop %v521
    %v526 = vrcp.pop %v524
    %v527 = vmul.f32 %v516, %v525
    %v528 = vmul.f32 %v518, %v526
    %529 = vrot.lane.b32.xlu0 %v199, 56
    %v530 = vpop.permute.xlu0 %529
    %531 = vrot.lane.b32.xlu0 %v204, 56
    %v532 = vpop.permute.xlu0 %531
    %v536 = vsel %vm303, %v527, 0
    %v539 = vsel %vm303, %v528, 0
    %541 = vmatprep.subr.mxu0 0.0
    %542 = vmatpush1.msra.mxu0 0.0
    %543 = vmatprep.subr.mxu0 0.0
    %544 = vmatpush1.msra.mxu0 0.0
    %545 = vmatprep.subr.mxu0 0.0
    %546 = vmatpush1.msra.mxu0 0.0
    %547 = vmatprep.subr.mxu0 0.0
    %548 = vmatpush1.msra.mxu0 0.0
    %549 = vmatprep.subr.mxu0 0.0
    %550 = vmatpush1.msra.mxu0 0.0
    %551 = vmatprep.subr.mxu0 0.0
    %552 = vmatpush1.msra.mxu0 0.0
    %553 = vmatprep.subr.mxu0 0.0
    %554 = vmatpush1.msra.mxu0 0.0
    %555 = vmatprep.subr.mxu0 0.0
    %556 = vmatpush1.msra.mxu0 0.0
    %557 = vmatprep.subr.mxu0 0.0
    %558 = vmatpush1.msra.mxu0 0.0
    %559 = vmatprep.subr.mxu0 0.0
    %560 = vmatpush1.msra.mxu0 0.0
    %561 = vmatprep.subr.mxu0 0.0
    %562 = vmatpush1.msra.mxu0 0.0
    %563 = vmatprep.subr.mxu0 0.0
    %564 = vmatpush1.msra.mxu0 0.0
    %565 = vmatprep.subr.mxu0 0.0
    %566 = vmatpush1.msra.mxu0 0.0
    %567 = vmatprep.subr.mxu0 0.0
    %568 = vmatpush1.msra.mxu0 0.0
    %569 = vmatprep.subr.mxu0 0.0
    %570 = vmatpush1.msra.mxu0 %v532
    %571 = vmatprep.subr.mxu0 0.0
    %572 = vmatpush1.msra.mxu0 %v530
    %573 = vmatprep.subr.mxu0 0.0
    %574 = vmatpush2.msra.mxu0 0.0
    %575 = vmatprep.subr.mxu0 0.0
    %576 = vmatpush2.msra.mxu0 0.0
    %577 = vmatprep.subr.mxu0 0.0
    %578 = vmatpush2.msra.mxu0 0.0
    %579 = vmatprep.subr.mxu0 0.0
    %580 = vmatpush2.msra.mxu0 0.0
    %581 = vmatprep.subr.mxu0 0.0
    %582 = vmatpush2.msra.mxu0 0.0
    %583 = vmatprep.subr.mxu0 0.0
    %584 = vmatpush2.msra.mxu0 0.0
    %585 = vmatprep.subr.mxu0 0.0
    %586 = vmatpush2.msra.mxu0 0.0
    %587 = vmatprep.subr.mxu0 0.0
    %588 = vmatpush2.msra.mxu0 0.0
    %589 = vmatprep.subr.mxu0 0.0
    %590 = vmatpush2.msra.mxu0 0.0
    %591 = vmatprep.subr.mxu0 0.0
    %592 = vmatpush2.msra.mxu0 0.0
    %593 = vmatprep.subr.mxu0 0.0
    %594 = vmatpush2.msra.mxu0 0.0
    %595 = vmatprep.subr.mxu0 0.0
    %596 = vmatpush2.msra.mxu0 0.0
    %597 = vmatprep.subr.mxu0 0.0
    %598 = vmatpush2.msra.mxu0 0.0
    %599 = vmatprep.subr.mxu0 0.0
    %600 = vmatpush2.msra.mxu0 0.0
    %601 = vmatprep.subr.mxu0 0.0
    %602 = vmatpush2.msra.mxu0 0.0
    %603 = vmatprep.subr.mxu0 0.0
    %604 = vmatpush2.msra.mxu0 0.0
    %605 = vmatprep.mubr.f32.mxu0 0.0
    %606 = vmatmul.mubr.f32.gmra.mxu0 %v536
    %v607 = vpop.f32.mrf.mxu0
    %v608 = vadd.f32 0.0, %v607
    %v609 = vpop.f32.mrf.mxu0
    %610 = vmatprep.mubr.f32.mxu0 0.0
    %611 = vmatmul.mubr.f32.gmra.mxu0 %v539
    %v612 = vpop.f32.mrf.mxu0
    %v613 = vadd.f32 0.0, %v612
    %v614 = vpop.f32.mrf.mxu0
    %615 = vdwg.mxu0
    %v616 = vld [vmem:[%s5 + $0x8] sm:$0xff]
    %v618 = vsel %vm217, %v608, 0
    %v621 = vsel %vm217, %v613, 0
    %623 = vmatprep.subr.mxu0 0.0
    %624 = vmatpush1.msra.mxu0 0.0
    %625 = vmatprep.subr.mxu0 0.0
    %626 = vmatpush1.msra.mxu0 0.0
    %627 = vmatprep.subr.mxu0 0.0
    %628 = vmatpush1.msra.mxu0 0.0
    %629 = vmatprep.subr.mxu0 0.0
    %630 = vmatpush1.msra.mxu0 0.0
    %631 = vmatprep.subr.mxu0 0.0
    %632 = vmatpush1.msra.mxu0 0.0
    %633 = vmatprep.subr.mxu0 0.0
    %634 = vmatpush1.msra.mxu0 0.0
    %635 = vmatprep.subr.mxu0 0.0
    %636 = vmatpush1.msra.mxu0 0.0
    %637 = vmatprep.subr.mxu0 0.0
    %638 = vmatpush1.msra.mxu0 0.0
    %639 = vmatprep.subr.mxu0 0.0
    %640 = vmatpush1.msra.mxu0 0.0
    %641 = vmatprep.subr.mxu0 0.0
    %642 = vmatpush1.msra.mxu0 0.0
    %643 = vmatprep.subr.mxu0 0.0
    %644 = vmatpush1.msra.mxu0 0.0
    %645 = vmatprep.subr.mxu0 0.0
    %646 = vmatpush1.msra.mxu0 0.0
    %647 = vmatprep.subr.mxu0 0.0
    %648 = vmatpush1.msra.mxu0 0.0
    %649 = vmatprep.subr.mxu0 0.0
    %650 = vmatpush1.msra.mxu0 0.0
    %651 = vmatprep.subr.mxu0 0.0
    %652 = vmatpush1.msra.mxu0 0.0
    %653 = vmatprep.subr.mxu0 0.0
    %654 = vmatpush1.msra.mxu0 %v616
    %655 = vmatprep.subr.mxu0 0.0
    %656 = vmatpush2.msra.mxu0 0.0
    %657 = vmatprep.subr.mxu0 0.0
    %658 = vmatpush2.msra.mxu0 0.0
    %659 = vmatprep.subr.mxu0 0.0
    %660 = vmatpush2.msra.mxu0 0.0
    %661 = vmatprep.subr.mxu0 0.0
    %662 = vmatpush2.msra.mxu0 0.0
    %663 = vmatprep.subr.mxu0 0.0
    %664 = vmatpush2.msra.mxu0 0.0
    %665 = vmatprep.subr.mxu0 0.0
    %666 = vmatpush2.msra.mxu0 0.0
    %667 = vmatprep.subr.mxu0 0.0
    %668 = vmatpush2.msra.mxu0 0.0
    %669 = vmatprep.subr.mxu0 0.0
    %670 = vmatpush2.msra.mxu0 0.0
    %671 = vmatprep.subr.mxu0 0.0
    %672 = vmatpush2.msra.mxu0 0.0
    %673 = vmatprep.subr.mxu0 0.0
    %674 = vmatpush2.msra.mxu0 0.0
    %675 = vmatprep.subr.mxu0 0.0
    %676 = vmatpush2.msra.mxu0 0.0
    %677 = vmatprep.subr.mxu0 0.0
    %678 = vmatpush2.msra.mxu0 0.0
    %679 = vmatprep.subr.mxu0 0.0
    %680 = vmatpush2.msra.mxu0 0.0
    %681 = vmatprep.subr.mxu0 0.0
    %682 = vmatpush2.msra.mxu0 0.0
    %683 = vmatprep.subr.mxu0 0.0
    %684 = vmatpush2.msra.mxu0 0.0
    %685 = vmatprep.subr.mxu0 0.0
    %686 = vmatpush2.msra.mxu0 0.0
    %687 = vmatprep.mubr.f32.mxu0 0.0
    %688 = vmatmul.mubr.f32.gmra.mxu0 %v618
    %v689 = vpop.f32.mrf.mxu0
    %v690 = vadd.f32 0.0, %v689
    %v691 = vpop.f32.mrf.mxu0
    %692 = vmatprep.mubr.f32.mxu0 0.0
    %693 = vmatmul.mubr.f32.gmra.mxu0 %v621
    %v694 = vpop.f32.mrf.mxu0
    %v695 = vadd.f32 0.0, %v694
    %v696 = vpop.f32.mrf.mxu0
    %697 = vdwg.mxu0
    %v699 = vsel %vm217, %v407, 0
    %v702 = vsel %vm217, %v412, 0
    %704 = vmatprep.subr.mxu0 0.0
    %705 = vmatpush1.msra.mxu0 0.0
    %706 = vmatprep.subr.mxu0 0.0
    %707 = vmatpush1.msra.mxu0 0.0
    %708 = vmatprep.subr.mxu0 0.0
    %709 = vmatpush1.msra.mxu0 0.0
    %710 = vmatprep.subr.mxu0 0.0
    %711 = vmatpush1.msra.mxu0 0.0
    %712 = vmatprep.subr.mxu0 0.0
    %713 = vmatpush1.msra.mxu0 0.0
    %714 = vmatprep.subr.mxu0 0.0
    %715 = vmatpush1.msra.mxu0 0.0
    %716 = vmatprep.subr.mxu0 0.0
    %717 = vmatpush1.msra.mxu0 0.0
    %718 = vmatprep.subr.mxu0 0.0
    %719 = vmatpush1.msra.mxu0 0.0
    %720 = vmatprep.subr.mxu0 0.0
    %721 = vmatpush1.msra.mxu0 0.0
    %722 = vmatprep.subr.mxu0 0.0
    %723 = vmatpush1.msra.mxu0 0.0
    %724 = vmatprep.subr.mxu0 0.0
    %725 = vmatpush1.msra.mxu0 0.0
    %726 = vmatprep.subr.mxu0 0.0
    %727 = vmatpush1.msra.mxu0 0.0
    %728 = vmatprep.subr.mxu0 0.0
    %729 = vmatpush1.msra.mxu0 0.0
    %730 = vmatprep.subr.mxu0 0.0
    %731 = vmatpush1.msra.mxu0 0.0
    %732 = vmatprep.subr.mxu0 0.0
    %733 = vmatpush1.msra.mxu0 0.0
    %734 = vmatprep.subr.mxu0 0.0
    %735 = vmatpush1.msra.mxu0 %v415
    %736 = vmatprep.subr.mxu0 0.0
    %737 = vmatpush2.msra.mxu0 0.0
    %738 = vmatprep.subr.mxu0 0.0
    %739 = vmatpush2.msra.mxu0 0.0
    %740 = vmatprep.subr.mxu0 0.0
    %741 = vmatpush2.msra.mxu0 0.0
    %742 = vmatprep.subr.mxu0 0.0
    %743 = vmatpush2.msra.mxu0 0.0
    %744 = vmatprep.subr.mxu0 0.0
    %745 = vmatpush2.msra.mxu0 0.0
    %746 = vmatprep.subr.mxu0 0.0
    %747 = vmatpush2.msra.mxu0 0.0
    %748 = vmatprep.subr.mxu0 0.0
    %749 = vmatpush2.msra.mxu0 0.0
    %750 = vmatprep.subr.mxu0 0.0
    %751 = vmatpush2.msra.mxu0 0.0
    %752 = vmatprep.subr.mxu0 0.0
    %753 = vmatpush2.msra.mxu0 0.0
    %754 = vmatprep.subr.mxu0 0.0
    %755 = vmatpush2.msra.mxu0 0.0
    %756 = vmatprep.subr.mxu0 0.0
    %757 = vmatpush2.msra.mxu0 0.0
    %758 = vmatprep.subr.mxu0 0.0
    %759 = vmatpush2.msra.mxu0 0.0
    %760 = vmatprep.subr.mxu0 0.0
    %761 = vmatpush2.msra.mxu0 0.0
    %762 = vmatprep.subr.mxu0 0.0
    %763 = vmatpush2.msra.mxu0 0.0
    %764 = vmatprep.subr.mxu0 0.0
    %765 = vmatpush2.msra.mxu0 0.0
    %766 = vmatprep.subr.mxu0 0.0
    %767 = vmatpush2.msra.mxu0 0.0
    %768 = vmatprep.mubr.f32.mxu0 0.0
    %769 = vmatmul.mubr.f32.gmra.mxu0 %v699
    %v770 = vpop.f32.mrf.mxu0
    %v771 = vadd.f32 %v690, %v770
    %v772 = vpop.f32.mrf.mxu0
    %773 = vmatprep.mubr.f32.mxu0 0.0
    %774 = vmatmul.mubr.f32.gmra.mxu0 %v702
    %v775 = vpop.f32.mrf.mxu0
    %v776 = vadd.f32 %v695, %v775
    %v777 = vpop.f32.mrf.mxu0
    %778 = vdwg.mxu0
    %779 = vrot.lane.b32.xlu0 %v207, 112
    %v780 = vpop.permute.xlu0 %779
    %781 = vrot.lane.b32.xlu0 %v208, 112
    %v782 = vpop.permute.xlu0 %781
    %783 = vrot.lane.b32.xlu0 %v189, 80
    %v784 = vpop.permute.xlu0 %783
    %785 = vrot.lane.b32.xlu0 %v194, 80
    %v786 = vpop.permute.xlu0 %785
    %v787 = vsel %vm217, %v780, 0
    %v789 = vsel %vm217, %v782, 0
    %v791 = vsel %vm217, %v784, 0
    %v793 = vsel %vm217, %v786, 0
    %795 = vmatprep.subr.mxu0 0.0
    %796 = vmatpush1.xpose.msra.mxu0 0.0
    %797 = vmatprep.subr.mxu0 0.0
    %798 = vmatpush1.xpose.msra.mxu0 0.0
    %799 = vmatprep.subr.mxu0 0.0
    %800 = vmatpush1.xpose.msra.mxu0 0.0
    %801 = vmatprep.subr.mxu0 0.0
    %802 = vmatpush1.xpose.msra.mxu0 0.0
    %803 = vmatprep.subr.mxu0 0.0
    %804 = vmatpush1.xpose.msra.mxu0 0.0
    %805 = vmatprep.subr.mxu0 0.0
    %806 = vmatpush1.xpose.msra.mxu0 0.0
    %807 = vmatprep.subr.mxu0 0.0
    %808 = vmatpush1.xpose.msra.mxu0 0.0
    %809 = vmatprep.subr.mxu0 0.0
    %810 = vmatpush1.xpose.msra.mxu0 0.0
    %811 = vmatprep.subr.mxu0 0.0
    %812 = vmatpush1.xpose.msra.mxu0 0.0
    %813 = vmatprep.subr.mxu0 0.0
    %814 = vmatpush1.xpose.msra.mxu0 0.0
    %815 = vmatprep.subr.mxu0 0.0
    %816 = vmatpush1.xpose.msra.mxu0 0.0
    %817 = vmatprep.subr.mxu0 0.0
    %818 = vmatpush1.xpose.msra.mxu0 0.0
    %819 = vmatprep.subr.mxu0 0.0
    %820 = vmatpush1.xpose.msra.mxu0 0.0
    %821 = vmatprep.subr.mxu0 0.0
    %822 = vmatpush1.xpose.msra.mxu0 0.0
    %823 = vmatprep.subr.mxu0 0.0
    %824 = vmatpush1.xpose.msra.mxu0 %v793
    %825 = vmatprep.subr.mxu0 0.0
    %826 = vmatpush1.xpose.msra.mxu0 %v791
    %827 = vmatprep.subr.mxu0 0.0
    %828 = vmatpush2.xpose.msra.mxu0 0.0
    %829 = vmatprep.subr.mxu0 0.0
    %830 = vmatpush2.xpose.msra.mxu0 0.0
    %831 = vmatprep.subr.mxu0 0.0
    %832 = vmatpush2.xpose.msra.mxu0 0.0
    %833 = vmatprep.subr.mxu0 0.0
    %834 = vmatpush2.xpose.msra.mxu0 0.0
    %835 = vmatprep.subr.mxu0 0.0
    %836 = vmatpush2.xpose.msra.mxu0 0.0
    %837 = vmatprep.subr.mxu0 0.0
    %838 = vmatpush2.xpose.msra.mxu0 0.0
    %839 = vmatprep.subr.mxu0 0.0
    %840 = vmatpush2.xpose.msra.mxu0 0.0
    %841 = vmatprep.subr.mxu0 0.0
    %842 = vmatpush2.xpose.msra.mxu0 0.0
    %843 = vmatprep.subr.mxu0 0.0
    %844 = vmatpush2.xpose.msra.mxu0 0.0
    %845 = vmatprep.subr.mxu0 0.0
    %846 = vmatpush2.xpose.msra.mxu0 0.0
    %847 = vmatprep.subr.mxu0 0.0
    %848 = vmatpush2.xpose.msra.mxu0 0.0
    %849 = vmatprep.subr.mxu0 0.0
    %850 = vmatpush2.xpose.msra.mxu0 0.0
    %851 = vmatprep.subr.mxu0 0.0
    %852 = vmatpush2.xpose.msra.mxu0 0.0
    %853 = vmatprep.subr.mxu0 0.0
    %854 = vmatpush2.xpose.msra.mxu0 0.0
    %855 = vmatprep.subr.mxu0 0.0
    %856 = vmatpush2.xpose.msra.mxu0 0.0
    %857 = vmatprep.subr.mxu0 0.0
    %858 = vmatpush2.xpose.msra.mxu0 0.0
    %859 = vmatprep.mubr.f32.mxu0 0.0
    %860 = vmatmul.mubr.f32.gmra.mxu0 %v787
    %v861 = vpop.f32.mrf.mxu0
    %v862 = vadd.f32 %v209, %v861
    %v863 = vpop.f32.mrf.mxu0
    %864 = vmatprep.mubr.f32.mxu0 0.0
    %865 = vmatmul.mubr.f32.gmra.mxu0 %v789
    %v866 = vpop.f32.mrf.mxu0
    %v867 = vadd.f32 %v210, %v866
    %v868 = vpop.f32.mrf.mxu0
    %869 = vdwg.mxu0
    %v870 = vsel %vm303, %v862, -inf
    %871 = vmax.xlane.f32.xlu0 %v870
    %v872 = vpop.xlane.xlu0 %871
    %v873 = vsel %vm303, %v867, -inf
    %874 = vmax.xlane.f32.xlu0 %v873
    %v875 = vpop.xlane.xlu0 %874
    %v876 = vsub.f32 %v862, %v872
    %v877 = vsub.f32 %v867, %v875
    %v878 = vmul.f32 %v876, 1.442695
    %v879 = vpow.pop %v878
    %v880 = vmul.f32 %v877, 1.442695
    %v881 = vpow.pop %v880
    %v882 = vsel %vm303, %v879, 0.0
    %883 = vadd.xlane.f32.xlu0 %v882
    %v884 = vpop.xlane.xlu0 %883
    %v885 = vsel %vm303, %v881, 0.0
    %886 = vadd.xlane.f32.xlu0 %v885
    %v887 = vpop.xlane.xlu0 %886
    %v888 = vrcp.pop %v884
    %v889 = vrcp.pop %v887
    %v890 = vmul.f32 %v879, %v888
    %v891 = vmul.f32 %v881, %v889
    %892 = vrot.lane.b32.xlu0 %v199, 48
    %v893 = vpop.permute.xlu0 %892
    %894 = vrot.lane.b32.xlu0 %v204, 48
    %v895 = vpop.permute.xlu0 %894
    %v899 = vsel %vm303, %v890, 0
    %v902 = vsel %vm303, %v891, 0
    %904 = vmatprep.subr.mxu0 0.0
    %905 = vmatpush1.msra.mxu0 0.0
    %906 = vmatprep.subr.mxu0 0.0
    %907 = vmatpush1.msra.mxu0 0.0
    %908 = vmatprep.subr.mxu0 0.0
    %909 = vmatpush1.msra.mxu0 0.0
    %910 = vmatprep.subr.mxu0 0.0
    %911 = vmatpush1.msra.mxu0 0.0
    %912 = vmatprep.subr.mxu0 0.0
    %913 = vmatpush1.msra.mxu0 0.0
    %914 = vmatprep.subr.mxu0 0.0
    %915 = vmatpush1.msra.mxu0 0.0
    %916 = vmatprep.subr.mxu0 0.0
    %917 = vmatpush1.msra.mxu0 0.0
    %918 = vmatprep.subr.mxu0 0.0
    %919 = vmatpush1.msra.mxu0 0.0
    %920 = vmatprep.subr.mxu0 0.0
    %921 = vmatpush1.msra.mxu0 0.0
    %922 = vmatprep.subr.mxu0 0.0
    %923 = vmatpush1.msra.mxu0 0.0
    %924 = vmatprep.subr.mxu0 0.0
    %925 = vmatpush1.msra.mxu0 0.0
    %926 = vmatprep.subr.mxu0 0.0
    %927 = vmatpush1.msra.mxu0 0.0
    %928 = vmatprep.subr.mxu0 0.0
    %929 = vmatpush1.msra.mxu0 0.0
    %930 = vmatprep.subr.mxu0 0.0
    %931 = vmatpush1.msra.mxu0 0.0
    %932 = vmatprep.subr.mxu0 0.0
    %933 = vmatpush1.msra.mxu0 %v895
    %934 = vmatprep.subr.mxu0 0.0
    %935 = vmatpush1.msra.mxu0 %v893
    %936 = vmatprep.subr.mxu0 0.0
    %937 = vmatpush2.msra.mxu0 0.0
    %938 = vmatprep.subr.mxu0 0.0
    %939 = vmatpush2.msra.mxu0 0.0
    %940 = vmatprep.subr.mxu0 0.0
    %941 = vmatpush2.msra.mxu0 0.0
    %942 = vmatprep.subr.mxu0 0.0
    %943 = vmatpush2.msra.mxu0 0.0
    %944 = vmatprep.subr.mxu0 0.0
    %945 = vmatpush2.msra.mxu0 0.0
    %946 = vmatprep.subr.mxu0 0.0
    %947 = vmatpush2.msra.mxu0 0.0
    %948 = vmatprep.subr.mxu0 0.0
    %949 = vmatpush2.msra.mxu0 0.0
    %950 = vmatprep.subr.mxu0 0.0
    %951 = vmatpush2.msra.mxu0 0.0
    %952 = vmatprep.subr.mxu0 0.0
    %953 = vmatpush2.msra.mxu0 0.0
    %954 = vmatprep.subr.mxu0 0.0
    %955 = vmatpush2.msra.mxu0 0.0
    %956 = vmatprep.subr.mxu0 0.0
    %957 = vmatpush2.msra.mxu0 0.0
    %958 = vmatprep.subr.mxu0 0.0
    %959 = vmatpush2.msra.mxu0 0.0
    %960 = vmatprep.subr.mxu0 0.0
    %961 = vmatpush2.msra.mxu0 0.0
    %962 = vmatprep.subr.mxu0 0.0
    %963 = vmatpush2.msra.mxu0 0.0
    %964 = vmatprep.subr.mxu0 0.0
    %965 = vmatpush2.msra.mxu0 0.0
    %966 = vmatprep.subr.mxu0 0.0
    %967 = vmatpush2.msra.mxu0 0.0
    %968 = vmatprep.mubr.f32.mxu0 0.0
    %969 = vmatmul.mubr.f32.gmra.mxu0 %v899
    %v970 = vpop.f32.mrf.mxu0
    %v971 = vadd.f32 0.0, %v970
    %v972 = vpop.f32.mrf.mxu0
    %973 = vmatprep.mubr.f32.mxu0 0.0
    %974 = vmatmul.mubr.f32.gmra.mxu0 %v902
    %v975 = vpop.f32.mrf.mxu0
    %v976 = vadd.f32 0.0, %v975
    %v977 = vpop.f32.mrf.mxu0
    %978 = vdwg.mxu0
    %v979 = vld [vmem:[%s5 + $0x10] sm:$0xff]
    %v981 = vsel %vm217, %v971, 0
    %v984 = vsel %vm217, %v976, 0
    %986 = vmatprep.subr.mxu0 0.0
    %987 = vmatpush1.msra.mxu0 0.0
    %988 = vmatprep.subr.mxu0 0.0
    %989 = vmatpush1.msra.mxu0 0.0
    %990 = vmatprep.subr.mxu0 0.0
    %991 = vmatpush1.msra.mxu0 0.0
    %992 = vmatprep.subr.mxu0 0.0
    %993 = vmatpush1.msra.mxu0 0.0
    %994 = vmatprep.subr.mxu0 0.0
    %995 = vmatpush1.msra.mxu0 0.0
    %996 = vmatprep.subr.mxu0 0.0
    %997 = vmatpush1.msra.mxu0 0.0
    %998 = vmatprep.subr.mxu0 0.0
    %999 = vmatpush1.msra.mxu0 0.0
    %1000 = vmatprep.subr.mxu0 0.0
    %1001 = vmatpush1.msra.mxu0 0.0
    %1002 = vmatprep.subr.mxu0 0.0
    %1003 = vmatpush1.msra.mxu0 0.0
    %1004 = vmatprep.subr.mxu0 0.0
    %1005 = vmatpush1.msra.mxu0 0.0
    %1006 = vmatprep.subr.mxu0 0.0
    %1007 = vmatpush1.msra.mxu0 0.0
    %1008 = vmatprep.subr.mxu0 0.0
    %1009 = vmatpush1.msra.mxu0 0.0
    %1010 = vmatprep.subr.mxu0 0.0
    %1011 = vmatpush1.msra.mxu0 0.0
    %1012 = vmatprep.subr.mxu0 0.0
    %1013 = vmatpush1.msra.mxu0 0.0
    %1014 = vmatprep.subr.mxu0 0.0
    %1015 = vmatpush1.msra.mxu0 0.0
    %1016 = vmatprep.subr.mxu0 0.0
    %1017 = vmatpush1.msra.mxu0 %v979
    %1018 = vmatprep.subr.mxu0 0.0
    %1019 = vmatpush2.msra.mxu0 0.0
    %1020 = vmatprep.subr.mxu0 0.0
    %1021 = vmatpush2.msra.mxu0 0.0
    %1022 = vmatprep.subr.mxu0 0.0
    %1023 = vmatpush2.msra.mxu0 0.0
    %1024 = vmatprep.subr.mxu0 0.0
    %1025 = vmatpush2.msra.mxu0 0.0
    %1026 = vmatprep.subr.mxu0 0.0
    %1027 = vmatpush2.msra.mxu0 0.0
    %1028 = vmatprep.subr.mxu0 0.0
    %1029 = vmatpush2.msra.mxu0 0.0
    %1030 = vmatprep.subr.mxu0 0.0
    %1031 = vmatpush2.msra.mxu0 0.0
    %1032 = vmatprep.subr.mxu0 0.0
    %1033 = vmatpush2.msra.mxu0 0.0
    %1034 = vmatprep.subr.mxu0 0.0
    %1035 = vmatpush2.msra.mxu0 0.0
    %1036 = vmatprep.subr.mxu0 0.0
    %1037 = vmatpush2.msra.mxu0 0.0
    %1038 = vmatprep.subr.mxu0 0.0
    %1039 = vmatpush2.msra.mxu0 0.0
    %1040 = vmatprep.subr.mxu0 0.0
    %1041 = vmatpush2.msra.mxu0 0.0
    %1042 = vmatprep.subr.mxu0 0.0
    %1043 = vmatpush2.msra.mxu0 0.0
    %1044 = vmatprep.subr.mxu0 0.0
    %1045 = vmatpush2.msra.mxu0 0.0
    %1046 = vmatprep.subr.mxu0 0.0
    %1047 = vmatpush2.msra.mxu0 0.0
    %1048 = vmatprep.subr.mxu0 0.0
    %1049 = vmatpush2.msra.mxu0 0.0
    %1050 = vmatprep.mubr.f32.mxu0 0.0
    %1051 = vmatmul.mubr.f32.gmra.mxu0 %v981
    %v1052 = vpop.f32.mrf.mxu0
    %v1053 = vadd.f32 0.0, %v1052
    %v1054 = vpop.f32.mrf.mxu0
    %1055 = vmatprep.mubr.f32.mxu0 0.0
    %1056 = vmatmul.mubr.f32.gmra.mxu0 %v984
    %v1057 = vpop.f32.mrf.mxu0
    %v1058 = vadd.f32 0.0, %v1057
    %v1059 = vpop.f32.mrf.mxu0
    %1060 = vdwg.mxu0
    %v1061 = vadd.f32 %v771, %v1053
    %v1062 = vadd.f32 %v776, %v1058
    %1063 = vrot.lane.b32.xlu0 %v207, 104
    %v1064 = vpop.permute.xlu0 %1063
    %1065 = vrot.lane.b32.xlu0 %v208, 104
    %v1066 = vpop.permute.xlu0 %1065
    %1067 = vrot.lane.b32.xlu0 %v189, 72
    %v1068 = vpop.permute.xlu0 %1067
    %1069 = vrot.lane.b32.xlu0 %v194, 72
    %v1070 = vpop.permute.xlu0 %1069
    %v1071 = vsel %vm217, %v1064, 0
    %v1073 = vsel %vm217, %v1066, 0
    %v1075 = vsel %vm217, %v1068, 0
    %v1077 = vsel %vm217, %v1070, 0
    %1079 = vmatprep.subr.mxu0 0.0
    %1080 = vmatpush1.xpose.msra.mxu0 0.0
    %1081 = vmatprep.subr.mxu0 0.0
    %1082 = vmatpush1.xpose.msra.mxu0 0.0
    %1083 = vmatprep.subr.mxu0 0.0
    %1084 = vmatpush1.xpose.msra.mxu0 0.0
    %1085 = vmatprep.subr.mxu0 0.0
    %1086 = vmatpush1.xpose.msra.mxu0 0.0
    %1087 = vmatprep.subr.mxu0 0.0
    %1088 = vmatpush1.xpose.msra.mxu0 0.0
    %1089 = vmatprep.subr.mxu0 0.0
    %1090 = vmatpush1.xpose.msra.mxu0 0.0
    %1091 = vmatprep.subr.mxu0 0.0
    %1092 = vmatpush1.xpose.msra.mxu0 0.0
    %1093 = vmatprep.subr.mxu0 0.0
    %1094 = vmatpush1.xpose.msra.mxu0 0.0
    %1095 = vmatprep.subr.mxu0 0.0
    %1096 = vmatpush1.xpose.msra.mxu0 0.0
    %1097 = vmatprep.subr.mxu0 0.0
    %1098 = vmatpush1.xpose.msra.mxu0 0.0
    %1099 = vmatprep.subr.mxu0 0.0
    %1100 = vmatpush1.xpose.msra.mxu0 0.0
    %1101 = vmatprep.subr.mxu0 0.0
    %1102 = vmatpush1.xpose.msra.mxu0 0.0
    %1103 = vmatprep.subr.mxu0 0.0
    %1104 = vmatpush1.xpose.msra.mxu0 0.0
    %1105 = vmatprep.subr.mxu0 0.0
    %1106 = vmatpush1.xpose.msra.mxu0 0.0
    %1107 = vmatprep.subr.mxu0 0.0
    %1108 = vmatpush1.xpose.msra.mxu0 %v1077
    %1109 = vmatprep.subr.mxu0 0.0
    %1110 = vmatpush1.xpose.msra.mxu0 %v1075
    %1111 = vmatprep.subr.mxu0 0.0
    %1112 = vmatpush2.xpose.msra.mxu0 0.0
    %1113 = vmatprep.subr.mxu0 0.0
    %1114 = vmatpush2.xpose.msra.mxu0 0.0
    %1115 = vmatprep.subr.mxu0 0.0
    %1116 = vmatpush2.xpose.msra.mxu0 0.0
    %1117 = vmatprep.subr.mxu0 0.0
    %1118 = vmatpush2.xpose.msra.mxu0 0.0
    %1119 = vmatprep.subr.mxu0 0.0
    %1120 = vmatpush2.xpose.msra.mxu0 0.0
    %1121 = vmatprep.subr.mxu0 0.0
    %1122 = vmatpush2.xpose.msra.mxu0 0.0
    %1123 = vmatprep.subr.mxu0 0.0
    %1124 = vmatpush2.xpose.msra.mxu0 0.0
    %1125 = vmatprep.subr.mxu0 0.0
    %1126 = vmatpush2.xpose.msra.mxu0 0.0
    %1127 = vmatprep.subr.mxu0 0.0
    %1128 = vmatpush2.xpose.msra.mxu0 0.0
    %1129 = vmatprep.subr.mxu0 0.0
    %1130 = vmatpush2.xpose.msra.mxu0 0.0
    %1131 = vmatprep.subr.mxu0 0.0
    %1132 = vmatpush2.xpose.msra.mxu0 0.0
    %1133 = vmatprep.subr.mxu0 0.0
    %1134 = vmatpush2.xpose.msra.mxu0 0.0
    %1135 = vmatprep.subr.mxu0 0.0
    %1136 = vmatpush2.xpose.msra.mxu0 0.0
    %1137 = vmatprep.subr.mxu0 0.0
    %1138 = vmatpush2.xpose.msra.mxu0 0.0
    %1139 = vmatprep.subr.mxu0 0.0
    %1140 = vmatpush2.xpose.msra.mxu0 0.0
    %1141 = vmatprep.subr.mxu0 0.0
    %1142 = vmatpush2.xpose.msra.mxu0 0.0
    %1143 = vmatprep.mubr.f32.mxu0 0.0
    %1144 = vmatmul.mubr.f32.gmra.mxu0 %v1071
    %v1145 = vpop.f32.mrf.mxu0
    %v1146 = vadd.f32 %v209, %v1145
    %v1147 = vpop.f32.mrf.mxu0
    %1148 = vmatprep.mubr.f32.mxu0 0.0
    %1149 = vmatmul.mubr.f32.gmra.mxu0 %v1073
    %v1150 = vpop.f32.mrf.mxu0
    %v1151 = vadd.f32 %v210, %v1150
    %v1152 = vpop.f32.mrf.mxu0
    %1153 = vdwg.mxu0
    %v1154 = vsel %vm303, %v1146, -inf
    %1155 = vmax.xlane.f32.xlu0 %v1154
    %v1156 = vpop.xlane.xlu0 %1155
    %v1157 = vsel %vm303, %v1151, -inf
    %1158 = vmax.xlane.f32.xlu0 %v1157
    %v1159 = vpop.xlane.xlu0 %1158
    %v1160 = vsub.f32 %v1146, %v1156
    %v1161 = vsub.f32 %v1151, %v1159
    %v1162 = vmul.f32 %v1160, 1.442695
    %v1163 = vpow.pop %v1162
    %v1164 = vmul.f32 %v1161, 1.442695
    %v1165 = vpow.pop %v1164
    %v1166 = vsel %vm303, %v1163, 0.0
    %1167 = vadd.xlane.f32.xlu0 %v1166
    %v1168 = vpop.xlane.xlu0 %1167
    %v1169 = vsel %vm303, %v1165, 0.0
    %1170 = vadd.xlane.f32.xlu0 %v1169
    %v1171 = vpop.xlane.xlu0 %1170
    %v1172 = vrcp.pop %v1168
    %v1173 = vrcp.pop %v1171
    %v1174 = vmul.f32 %v1163, %v1172
    %v1175 = vmul.f32 %v1165, %v1173
    %1176 = vrot.lane.b32.xlu0 %v199, 40
    %v1177 = vpop.permute.xlu0 %1176
    %1178 = vrot.lane.b32.xlu0 %v204, 40
    %v1179 = vpop.permute.xlu0 %1178
    %v1183 = vsel %vm303, %v1174, 0
    %v1186 = vsel %vm303, %v1175, 0
    %1188 = vmatprep.subr.mxu0 0.0
    %1189 = vmatpush1.msra.mxu0 0.0
    %1190 = vmatprep.subr.mxu0 0.0
    %1191 = vmatpush1.msra.mxu0 0.0
    %1192 = vmatprep.subr.mxu0 0.0
    %1193 = vmatpush1.msra.mxu0 0.0
    %1194 = vmatprep.subr.mxu0 0.0
    %1195 = vmatpush1.msra.mxu0 0.0
    %1196 = vmatprep.subr.mxu0 0.0
    %1197 = vmatpush1.msra.mxu0 0.0
    %1198 = vmatprep.subr.mxu0 0.0
    %1199 = vmatpush1.msra.mxu0 0.0
    %1200 = vmatprep.subr.mxu0 0.0
    %1201 = vmatpush1.msra.mxu0 0.0
    %1202 = vmatprep.subr.mxu0 0.0
    %1203 = vmatpush1.msra.mxu0 0.0
    %1204 = vmatprep.subr.mxu0 0.0
    %1205 = vmatpush1.msra.mxu0 0.0
    %1206 = vmatprep.subr.mxu0 0.0
    %1207 = vmatpush1.msra.mxu0 0.0
    %1208 = vmatprep.subr.mxu0 0.0
    %1209 = vmatpush1.msra.mxu0 0.0
    %1210 = vmatprep.subr.mxu0 0.0
    %1211 = vmatpush1.msra.mxu0 0.0
    %1212 = vmatprep.subr.mxu0 0.0
    %1213 = vmatpush1.msra.mxu0 0.0
    %1214 = vmatprep.subr.mxu0 0.0
    %1215 = vmatpush1.msra.mxu0 0.0
    %1216 = vmatprep.subr.mxu0 0.0
    %1217 = vmatpush1.msra.mxu0 %v1179
    %1218 = vmatprep.subr.mxu0 0.0
    %1219 = vmatpush1.msra.mxu0 %v1177
    %1220 = vmatprep.subr.mxu0 0.0
    %1221 = vmatpush2.msra.mxu0 0.0
    %1222 = vmatprep.subr.mxu0 0.0
    %1223 = vmatpush2.msra.mxu0 0.0
    %1224 = vmatprep.subr.mxu0 0.0
    %1225 = vmatpush2.msra.mxu0 0.0
    %1226 = vmatprep.subr.mxu0 0.0
    %1227 = vmatpush2.msra.mxu0 0.0
    %1228 = vmatprep.subr.mxu0 0.0
    %1229 = vmatpush2.msra.mxu0 0.0
    %1230 = vmatprep.subr.mxu0 0.0
    %1231 = vmatpush2.msra.mxu0 0.0
    %1232 = vmatprep.subr.mxu0 0.0
    %1233 = vmatpush2.msra.mxu0 0.0
    %1234 = vmatprep.subr.mxu0 0.0
    %1235 = vmatpush2.msra.mxu0 0.0
    %1236 = vmatprep.subr.mxu0 0.0
    %1237 = vmatpush2.msra.mxu0 0.0
    %1238 = vmatprep.subr.mxu0 0.0
    %1239 = vmatpush2.msra.mxu0 0.0
    %1240 = vmatprep.subr.mxu0 0.0
    %1241 = vmatpush2.msra.mxu0 0.0
    %1242 = vmatprep.subr.mxu0 0.0
    %1243 = vmatpush2.msra.mxu0 0.0
    %1244 = vmatprep.subr.mxu0 0.0
    %1245 = vmatpush2.msra.mxu0 0.0
    %1246 = vmatprep.subr.mxu0 0.0
    %1247 = vmatpush2.msra.mxu0 0.0
    %1248 = vmatprep.subr.mxu0 0.0
    %1249 = vmatpush2.msra.mxu0 0.0
    %1250 = vmatprep.subr.mxu0 0.0
    %1251 = vmatpush2.msra.mxu0 0.0
    %1252 = vmatprep.mubr.f32.mxu0 0.0
    %1253 = vmatmul.mubr.f32.gmra.mxu0 %v1183
    %v1254 = vpop.f32.mrf.mxu0
    %v1255 = vadd.f32 0.0, %v1254
    %v1256 = vpop.f32.mrf.mxu0
    %1257 = vmatprep.mubr.f32.mxu0 0.0
    %1258 = vmatmul.mubr.f32.gmra.mxu0 %v1186
    %v1259 = vpop.f32.mrf.mxu0
    %v1260 = vadd.f32 0.0, %v1259
    %v1261 = vpop.f32.mrf.mxu0
    %1262 = vdwg.mxu0
    %v1263 = vld [vmem:[%s5 + $0x18] sm:$0xff]
    %v1265 = vsel %vm217, %v1255, 0
    %v1268 = vsel %vm217, %v1260, 0
    %1270 = vmatprep.subr.mxu0 0.0
    %1271 = vmatpush1.msra.mxu0 0.0
    %1272 = vmatprep.subr.mxu0 0.0
    %1273 = vmatpush1.msra.mxu0 0.0
    %1274 = vmatprep.subr.mxu0 0.0
    %1275 = vmatpush1.msra.mxu0 0.0
    %1276 = vmatprep.subr.mxu0 0.0
    %1277 = vmatpush1.msra.mxu0 0.0
    %1278 = vmatprep.subr.mxu0 0.0
    %1279 = vmatpush1.msra.mxu0 0.0
    %1280 = vmatprep.subr.mxu0 0.0
    %1281 = vmatpush1.msra.mxu0 0.0
    %1282 = vmatprep.subr.mxu0 0.0
    %1283 = vmatpush1.msra.mxu0 0.0
    %1284 = vmatprep.subr.mxu0 0.0
    %1285 = vmatpush1.msra.mxu0 0.0
    %1286 = vmatprep.subr.mxu0 0.0
    %1287 = vmatpush1.msra.mxu0 0.0
    %1288 = vmatprep.subr.mxu0 0.0
    %1289 = vmatpush1.msra.mxu0 0.0
    %1290 = vmatprep.subr.mxu0 0.0
    %1291 = vmatpush1.msra.mxu0 0.0
    %1292 = vmatprep.subr.mxu0 0.0
    %1293 = vmatpush1.msra.mxu0 0.0
    %1294 = vmatprep.subr.mxu0 0.0
    %1295 = vmatpush1.msra.mxu0 0.0
    %1296 = vmatprep.subr.mxu0 0.0
    %1297 = vmatpush1.msra.mxu0 0.0
    %1298 = vmatprep.subr.mxu0 0.0
    %1299 = vmatpush1.msra.mxu0 0.0
    %1300 = vmatprep.subr.mxu0 0.0
    %1301 = vmatpush1.msra.mxu0 %v1263
    %1302 = vmatprep.subr.mxu0 0.0
    %1303 = vmatpush2.msra.mxu0 0.0
    %1304 = vmatprep.subr.mxu0 0.0
    %1305 = vmatpush2.msra.mxu0 0.0
    %1306 = vmatprep.subr.mxu0 0.0
    %1307 = vmatpush2.msra.mxu0 0.0
    %1308 = vmatprep.subr.mxu0 0.0
    %1309 = vmatpush2.msra.mxu0 0.0
    %1310 = vmatprep.subr.mxu0 0.0
    %1311 = vmatpush2.msra.mxu0 0.0
    %1312 = vmatprep.subr.mxu0 0.0
    %1313 = vmatpush2.msra.mxu0 0.0
    %1314 = vmatprep.subr.mxu0 0.0
    %1315 = vmatpush2.msra.mxu0 0.0
    %1316 = vmatprep.subr.mxu0 0.0
    %1317 = vmatpush2.msra.mxu0 0.0
    %1318 = vmatprep.subr.mxu0 0.0
    %1319 = vmatpush2.msra.mxu0 0.0
    %1320 = vmatprep.subr.mxu0 0.0
    %1321 = vmatpush2.msra.mxu0 0.0
    %1322 = vmatprep.subr.mxu0 0.0
    %1323 = vmatpush2.msra.mxu0 0.0
    %1324 = vmatprep.subr.mxu0 0.0
    %1325 = vmatpush2.msra.mxu0 0.0
    %1326 = vmatprep.subr.mxu0 0.0
    %1327 = vmatpush2.msra.mxu0 0.0
    %1328 = vmatprep.subr.mxu0 0.0
    %1329 = vmatpush2.msra.mxu0 0.0
    %1330 = vmatprep.subr.mxu0 0.0
    %1331 = vmatpush2.msra.mxu0 0.0
    %1332 = vmatprep.subr.mxu0 0.0
    %1333 = vmatpush2.msra.mxu0 0.0
    %1334 = vmatprep.mubr.f32.mxu0 0.0
    %1335 = vmatmul.mubr.f32.gmra.mxu0 %v1265
    %v1336 = vpop.f32.mrf.mxu0
    %v1337 = vadd.f32 0.0, %v1336
    %v1338 = vpop.f32.mrf.mxu0
    %1339 = vmatprep.mubr.f32.mxu0 0.0
    %1340 = vmatmul.mubr.f32.gmra.mxu0 %v1268
    %v1341 = vpop.f32.mrf.mxu0
    %v1342 = vadd.f32 0.0, %v1341
    %v1343 = vpop.f32.mrf.mxu0
    %1344 = vdwg.mxu0
    %v1345 = vadd.f32 %v1061, %v1337
    %v1346 = vadd.f32 %v1062, %v1342
    %v1347 = vld [vmem:[%s6] sm:$0x1]
    %v1349 = vlaneseq
    %v1350 = vshrl.u32 %v1349, 7
    %v1351 = vsub.s32 0, %v1350
    %v1352 = vrot.slane %v1347, %v1351
    %v1354 = vadd.f32 %v1345, %v1352
    %v1355 = vadd.f32 %v1346, %v1352
    %v1356 = vadd.f32 %v92, %v1354
    %v1357 = vadd.f32 %v93, %v1355
    %v1358 = vld [vmem:[%s7] sm:$0x1]
    %v1359 = vld [vmem:[%s8] sm:$0x1]
    %v1360 = vsel %vm109, %v1356, 0.0
    %1361 = vadd.xlane.f32.xlu0 %v1360
    %v1362 = vpop.xlane.xlu0 %1361
    %v1363 = vsel %vm109, %v1357, 0.0
    %1364 = vadd.xlane.f32.xlu0 %v1363
    %v1365 = vpop.xlane.xlu0 %1364
    %v1366 = vrcp.pop 32.0
    %v1367 = vmul.f32 %v1362, %v1366
    %v1368 = vmul.f32 %v1365, %v1366
    %v1369 = vsub.f32 %v1356, %v1367
    %v1370 = vsub.f32 %v1357, %v1368
    %v1371 = vmul.f32 %v1369, %v1369
    %v1372 = vmul.f32 %v1370, %v1370
    %v1373 = vsel %vm109, %v1371, 0.0
    %1374 = vadd.xlane.f32.xlu0 %v1373
    %v1375 = vpop.xlane.xlu0 %1374
    %v1376 = vsel %vm109, %v1372, 0.0
    %1377 = vadd.xlane.f32.xlu0 %v1376
    %v1378 = vpop.xlane.xlu0 %1377
    %v1379 = vmul.f32 %v1375, %v1366
    %v1380 = vmul.f32 %v1378, %v1366
    %v1381 = vadd.f32 %v1379, 1e-05
    %v1382 = vadd.f32 %v1380, 1e-05
    %v1383 = vrsqrt.pop %v1381
    %v1384 = vrsqrt.pop %v1382
    %v1385 = vmul.f32 %v1369, %v1383
    %v1386 = vmul.f32 %v1370, %v1384
    %v1388 = vlaneseq
    %v1389 = vshrl.u32 %v1388, 7
    %v1390 = vsub.s32 0, %v1389
    %v1391 = vrot.slane %v1358, %v1390
    %v1393 = vmul.f32 %v1385, %v1391
    %v1394 = vmul.f32 %v1386, %v1391
    %v1396 = vlaneseq
    %v1397 = vshrl.u32 %v1396, 7
    %v1398 = vsub.s32 0, %v1397
    %v1399 = vrot.slane %v1359, %v1398
    %v1401 = vadd.f32 %v1393, %v1399
    %v1402 = vadd.f32 %v1394, %v1399
    %v1403 = vld [vmem:[%s9] sm:$0xff]
    %v1404 = vld [vmem:[%s9 + $0x8] sm:$0xff]
    %v1405 = vld [vmem:[%s9 + $0x10] sm:$0xff]
    %v1406 = vld [vmem:[%s9 + $0x18] sm:$0xff]
    %v1407 = vld [vmem:[%s10] sm:$0x1]
    %v1409 = vlaneseq
    %v1410 = vshrl.u32 %v1409, 7
    %v1411 = vsub.s32 0, %v1410
    %v1412 = vrot.slane %v1407, %v1411
    %v1415 = vsel %vm109, %v1401, 0
    %v1418 = vsel %vm109, %v1402, 0
    %1420 = vmatprep.subr.mxu0 0.0
    %1421 = vmatpush1.msra.mxu0 0.0
    %1422 = vmatprep.subr.mxu0 0.0
    %1423 = vmatpush1.msra.mxu0 0.0
    %1424 = vmatprep.subr.mxu0 0.0
    %1425 = vmatpush1.msra.mxu0 0.0
    %1426 = vmatprep.subr.mxu0 0.0
    %1427 = vmatpush1.msra.mxu0 0.0
    %1428 = vmatprep.subr.mxu0 0.0
    %1429 = vmatpush1.msra.mxu0 0.0
    %1430 = vmatprep.subr.mxu0 0.0
    %1431 = vmatpush1.msra.mxu0 0.0
    %1432 = vmatprep.subr.mxu0 0.0
    %1433 = vmatpush1.msra.mxu0 0.0
    %1434 = vmatprep.subr.mxu0 0.0
    %1435 = vmatpush1.msra.mxu0 0.0
    %1436 = vmatprep.subr.mxu0 0.0
    %1437 = vmatpush1.msra.mxu0 0.0
    %1438 = vmatprep.subr.mxu0 0.0
    %1439 = vmatpush1.msra.mxu0 0.0
    %1440 = vmatprep.subr.mxu0 0.0
    %1441 = vmatpush1.msra.mxu0 0.0
    %1442 = vmatprep.subr.mxu0 0.0
    %1443 = vmatpush1.msra.mxu0 0.0
    %1444 = vmatprep.subr.mxu0 0.0
    %1445 = vmatpush1.msra.mxu0 %v1406
    %1446 = vmatprep.subr.mxu0 0.0
    %1447 = vmatpush1.msra.mxu0 %v1405
    %1448 = vmatprep.subr.mxu0 0.0
    %1449 = vmatpush1.msra.mxu0 %v1404
    %1450 = vmatprep.subr.mxu0 0.0
    %1451 = vmatpush1.msra.mxu0 %v1403
    %1452 = vmatprep.subr.mxu0 0.0
    %1453 = vmatpush2.msra.mxu0 0.0
    %1454 = vmatprep.subr.mxu0 0.0
    %1455 = vmatpush2.msra.mxu0 0.0
    %1456 = vmatprep.subr.mxu0 0.0
    %1457 = vmatpush2.msra.mxu0 0.0
    %1458 = vmatprep.subr.mxu0 0.0
    %1459 = vmatpush2.msra.mxu0 0.0
    %1460 = vmatprep.subr.mxu0 0.0
    %1461 = vmatpush2.msra.mxu0 0.0
    %1462 = vmatprep.subr.mxu0 0.0
    %1463 = vmatpush2.msra.mxu0 0.0
    %1464 = vmatprep.subr.mxu0 0.0
    %1465 = vmatpush2.msra.mxu0 0.0
    %1466 = vmatprep.subr.mxu0 0.0
    %1467 = vmatpush2.msra.mxu0 0.0
    %1468 = vmatprep.subr.mxu0 0.0
    %1469 = vmatpush2.msra.mxu0 0.0
    %1470 = vmatprep.subr.mxu0 0.0
    %1471 = vmatpush2.msra.mxu0 0.0
    %1472 = vmatprep.subr.mxu0 0.0
    %1473 = vmatpush2.msra.mxu0 0.0
    %1474 = vmatprep.subr.mxu0 0.0
    %1475 = vmatpush2.msra.mxu0 0.0
    %1476 = vmatprep.subr.mxu0 0.0
    %1477 = vmatpush2.msra.mxu0 0.0
    %1478 = vmatprep.subr.mxu0 0.0
    %1479 = vmatpush2.msra.mxu0 0.0
    %1480 = vmatprep.subr.mxu0 0.0
    %1481 = vmatpush2.msra.mxu0 0.0
    %1482 = vmatprep.subr.mxu0 0.0
    %1483 = vmatpush2.msra.mxu0 0.0
    %1484 = vmatprep.mubr.f32.mxu0 0.0
    %1485 = vmatmul.mubr.f32.gmra.mxu0 %v1415
    %v1486 = vpop.f32.mrf.mxu0
    %v1487 = vadd.f32 %v1412, %v1486
    %v1488 = vpop.f32.mrf.mxu0
    %1489 = vmatprep.mubr.f32.mxu0 0.0
    %1490 = vmatmul.mubr.f32.gmra.mxu0 %v1418
    %v1491 = vpop.f32.mrf.mxu0
    %v1492 = vadd.f32 %v1412, %v1491
    %v1493 = vpop.f32.mrf.mxu0
    %1494 = vdwg.mxu0
    %v1495 = vmax.f32 %v1487, 0.0
    %v1496 = vmax.f32 %v1492, 0.0
    %v1497 = vld [vmem:[%s11] sm:$0xff]
    %v1498 = vld [vmem:[%s11 + $0x8] sm:$0xff]
    %v1499 = vld [vmem:[%s11 + $0x10] sm:$0xff]
    %v1500 = vld [vmem:[%s11 + $0x18] sm:$0xff]
    %v1501 = vld [vmem:[%s11 + $0x20] sm:$0xff]
    %v1502 = vld [vmem:[%s11 + $0x28] sm:$0xff]
    %v1503 = vld [vmem:[%s11 + $0x30] sm:$0xff]
    %v1504 = vld [vmem:[%s11 + $0x38] sm:$0xff]
    %v1505 = vld [vmem:[%s12] sm:$0x1]
    %v1507 = vlaneseq
    %v1508 = vshrl.u32 %v1507, 7
    %v1509 = vsub.s32 0, %v1508
    %v1510 = vrot.slane %v1505, %v1509
    %vm1512 = vcmask 523264
    %v1514 = vsel %vm1512, %v1495, 0
    %v1517 = vsel %vm1512, %v1496, 0
    %1519 = vmatprep.subr.mxu0 0.0
    %1520 = vmatpush1.msra.mxu0 0.0
    %1521 = vmatprep.subr.mxu0 0.0
    %1522 = vmatpush1.msra.mxu0 0.0
    %1523 = vmatprep.subr.mxu0 0.0
    %1524 = vmatpush1.msra.mxu0 0.0
    %1525 = vmatprep.subr.mxu0 0.0
    %1526 = vmatpush1.msra.mxu0 0.0
    %1527 = vmatprep.subr.mxu0 0.0
    %1528 = vmatpush1.msra.mxu0 0.0
    %1529 = vmatprep.subr.mxu0 0.0
    %1530 = vmatpush1.msra.mxu0 0.0
    %1531 = vmatprep.subr.mxu0 0.0
    %1532 = vmatpush1.msra.mxu0 0.0
    %1533 = vmatprep.subr.mxu0 0.0
    %1534 = vmatpush1.msra.mxu0 0.0
    %1535 = vmatprep.subr.mxu0 0.0
    %1536 = vmatpush1.msra.mxu0 %v1504
    %1537 = vmatprep.subr.mxu0 0.0
    %1538 = vmatpush1.msra.mxu0 %v1503
    %1539 = vmatprep.subr.mxu0 0.0
    %1540 = vmatpush1.msra.mxu0 %v1502
    %1541 = vmatprep.subr.mxu0 0.0
    %1542 = vmatpush1.msra.mxu0 %v1501
    %1543 = vmatprep.subr.mxu0 0.0
    %1544 = vmatpush1.msra.mxu0 %v1500
    %1545 = vmatprep.subr.mxu0 0.0
    %1546 = vmatpush1.msra.mxu0 %v1499
    %1547 = vmatprep.subr.mxu0 0.0
    %1548 = vmatpush1.msra.mxu0 %v1498
    %1549 = vmatprep.subr.mxu0 0.0
    %1550 = vmatpush1.msra.mxu0 %v1497
    %1551 = vmatprep.subr.mxu0 0.0
    %1552 = vmatpush2.msra.mxu0 0.0
    %1553 = vmatprep.subr.mxu0 0.0
    %1554 = vmatpush2.msra.mxu0 0.0
    %1555 = vmatprep.subr.mxu0 0.0
    %1556 = vmatpush2.msra.mxu0 0.0
    %1557 = vmatprep.subr.mxu0 0.0
    %1558 = vmatpush2.msra.mxu0 0.0
    %1559 = vmatprep.subr.mxu0 0.0
    %1560 = vmatpush2.msra.mxu0 0.0
    %1561 = vmatprep.subr.mxu0 0.0
    %1562 = vmatpush2.msra.mxu0 0.0
    %1563 = vmatprep.subr.mxu0 0.0
    %1564 = vmatpush2.msra.mxu0 0.0
    %1565 = vmatprep.subr.mxu0 0.0
    %1566 = vmatpush2.msra.mxu0 0.0
    %1567 = vmatprep.subr.mxu0 0.0
    %1568 = vmatpush2.msra.mxu0 0.0
    %1569 = vmatprep.subr.mxu0 0.0
    %1570 = vmatpush2.msra.mxu0 0.0
    %1571 = vmatprep.subr.mxu0 0.0
    %1572 = vmatpush2.msra.mxu0 0.0
    %1573 = vmatprep.subr.mxu0 0.0
    %1574 = vmatpush2.msra.mxu0 0.0
    %1575 = vmatprep.subr.mxu0 0.0
    %1576 = vmatpush2.msra.mxu0 0.0
    %1577 = vmatprep.subr.mxu0 0.0
    %1578 = vmatpush2.msra.mxu0 0.0
    %1579 = vmatprep.subr.mxu0 0.0
    %1580 = vmatpush2.msra.mxu0 0.0
    %1581 = vmatprep.subr.mxu0 0.0
    %1582 = vmatpush2.msra.mxu0 0.0
    %1583 = vmatprep.mubr.f32.mxu0 0.0
    %1584 = vmatmul.mubr.f32.gmra.mxu0 %v1514
    %v1585 = vpop.f32.mrf.mxu0
    %v1586 = vadd.f32 %v1510, %v1585
    %v1587 = vpop.f32.mrf.mxu0
    %1588 = vmatprep.mubr.f32.mxu0 0.0
    %1589 = vmatmul.mubr.f32.gmra.mxu0 %v1517
    %v1590 = vpop.f32.mrf.mxu0
    %v1591 = vadd.f32 %v1510, %v1590
    %v1592 = vpop.f32.mrf.mxu0
    %1593 = vdwg.mxu0
    %v1594 = vadd.f32 %v1401, %v1586
    %v1595 = vadd.f32 %v1402, %v1591
    %v1596 = vld [vmem:[%s13] sm:$0x1]
    %v1597 = vld [vmem:[%s14] sm:$0x1]
    %v1598 = vsel %vm109, %v1594, 0.0
    %1599 = vadd.xlane.f32.xlu0 %v1598
    %v1600 = vpop.xlane.xlu0 %1599
    %v1601 = vsel %vm109, %v1595, 0.0
    %1602 = vadd.xlane.f32.xlu0 %v1601
    %v1603 = vpop.xlane.xlu0 %1602
    %v1604 = vmul.f32 %v1600, %v1366
    %v1605 = vmul.f32 %v1603, %v1366
    %v1606 = vsub.f32 %v1594, %v1604
    %v1607 = vsub.f32 %v1595, %v1605
    %v1608 = vmul.f32 %v1606, %v1606
    %v1609 = vmul.f32 %v1607, %v1607
    %v1610 = vsel %vm109, %v1608, 0.0
    %1611 = vadd.xlane.f32.xlu0 %v1610
    %v1612 = vpop.xlane.xlu0 %1611
    %v1613 = vsel %vm109, %v1609, 0.0
    %1614 = vadd.xlane.f32.xlu0 %v1613
    %v1615 = vpop.xlane.xlu0 %1614
    %v1616 = vmul.f32 %v1612, %v1366
    %v1617 = vmul.f32 %v1615, %v1366
    %v1618 = vadd.f32 %v1616, 1e-05
    %v1619 = vadd.f32 %v1617, 1e-05
    %v1620 = vrsqrt.pop %v1618
    %v1621 = vrsqrt.pop %v1619
    %v1622 = vmul.f32 %v1606, %v1620
    %v1623 = vmul.f32 %v1607, %v1621
    %v1625 = vlaneseq
    %v1626 = vshrl.u32 %v1625, 7
    %v1627 = vsub.s32 0, %v1626
    %v1628 = vrot.slane %v1596, %v1627
    %v1630 = vmul.f32 %v1622, %v1628
    %v1631 = vmul.f32 %v1623, %v1628
    %v1633 = vlaneseq
    %v1634 = vshrl.u32 %v1633, 7
    %v1635 = vsub.s32 0, %v1634
    %v1636 = vrot.slane %v1597, %v1635
    %v1638 = vadd.f32 %v1630, %v1636
    %v1639 = vadd.f32 %v1631, %v1636
    %1640 = vst.msk [vmem:[#allocation8] sm:$0xff] %vm109, %v1638
    %1641 = vst.msk [vmem:[#allocation8 + $0x8] sm:$0xff] %vm109, %v1639
    // Predicated region
    $region74: #{tpu_custom_call.1} parent=1 // pred_check
      _
    $region75: #{tpu_custom_call.1} parent=1 // pred_check_branch
      %1643 = sbr.rel (0) target = $region77
    $region76: #{tpu_custom_call.1} parent=1 // pred_region
      %s1645 = ssub.s32 256, 256
      %1646 = vsyncadd [#allocation4], %s1645
      %s1647 = sshll.u32 [#allocation8], 4
      %s1648 = int_to_ptr.vmem [resolvable:$true] %s1647
      %1653 = dma.vmem_to_hbm [thread:$0]  %s1648, 256, %s15, [#allocation4], 128, 128, 8
    $region77: #{tpu_custom_call.1} parent=1 // pred_fallthru
      _
    // Predicated region
    $region78: #{tpu_custom_call.1} parent=1 // pred_check
      _
    $region79: #{tpu_custom_call.1} parent=1 // pred_check_branch
      %1655 = sbr.rel (0) target = $region81
    $region80: #{tpu_custom_call.1} parent=1 // pred_region
      %1656 = dma.done [#allocation4], 256
    $region81: #{tpu_custom_call.1} parent=1 // pred_fallthru
      _
    %1657 = vsyncpa [#allocation3], 1
    %1658 = vsyncpa [#allocation6], 1
    %1659 = vsyncpa [#allocation4], 1

</llo_original>
